<compile_context>
chip_gen: v7x
topology: tpu7x:2x2x1
jax: 0.10.0
libtpu: 0.0.40
codegen_flags: <defaults>
</compile_context>

<pallas_src>
import functools

import jax
import jax.numpy as jnp
from jax.experimental import pallas as pl
from jax.experimental.pallas import tpu as pltpu


# --------------------------------------------------------------------------- #
# Helpers
# --------------------------------------------------------------------------- #
def _round_up(x, m):
    return ((x + m - 1) // m) * m


def _cdiv(a, b):
    return (a + b - 1) // b


def _vmem_capacity_bytes():
    """Generation-aware VMEM capacity (v5e/v6e: 128 MiB, v7x: 64 MiB per TC)."""
    try:
        info = pltpu.get_tpu_info()
        for attr in ("vmem_capacity_bytes", "vmem_bytes", "vmem_size_bytes"):
            v = getattr(info, attr, None)
            if v:
                return int(v)
    except Exception:
        pass
    return 64 * 1024 * 1024  # conservative fallback (v7x per-TC size)


def _vmem_estimate(tile_n, RJ, R, K, J, in_itemsize):
    lane = 128
    img_b = RJ * max(_round_up(K, lane), lane) * in_itemsize      # resident input (1 buffer)
    out_b = 2 * _round_up(R, 8) * tile_n * 4                      # output double buffer
    w_b = (_round_up(K, 8) + _round_up(J, 8)) * tile_n * (4 + in_itemsize)  # wk (+bf16), wj
    acc_b = 3 * RJ * tile_n * 4                                   # stage-1 result + product + slack
    coord_b = 12 * tile_n * 4                                     # (1, tile) coordinate vectors
    return img_b + out_b + w_b + acc_b + coord_b


def _choose_tile_n(HW, RJ, R, K, J, in_itemsize, budget):
    hw128 = _round_up(HW, 128)
    tile = 128
    for cand in (2048, 1024, 512, 256, 128):
        if cand > hw128:
            continue
        if _vmem_estimate(cand, RJ, R, K, J, in_itemsize) <= budget:
            tile = cand
            break
    # v7x megacore: keep >= ~4 "parallel" grid steps so both TensorCores get work.
    while tile > 128 and _cdiv(HW, tile) < 4:
        tile //= 2
    return tile


# --------------------------------------------------------------------------- #
# Pallas kernel: factored bilinear perspective resample for one output tile.
# --------------------------------------------------------------------------- #
def _perspective_sample_kernel(coef_ref, img_ref, out_ref, *,
                               H, W, R, K, Jp, TILE_N, transposed):
    HW = H * W
    c0, c1, c2, c3 = coef_ref[0], coef_ref[1], coef_ref[2], coef_ref[3]
    c4, c5, c6, c7 = coef_ref[4], coef_ref[5], coef_ref[6], coef_ref[7]

    # ---- output pixel coordinates for this tile (lane axis) -----------------
    base = pl.program_id(0) * TILE_N
    p = base + jax.lax.broadcasted_iota(jnp.int32, (1, TILE_N), 1)
    p = jnp.minimum(p, HW - 1)                 # clamp lane padding (wrapper discards)
    if (W & (W - 1)) == 0:                     # static strength-reduction of div/mod
        sh = W.bit_length() - 1
        oy_i = p >> sh
        ox_i = p & (W - 1)
    else:
        oy_i = p // W
        ox_i = p - oy_i * W
    oy = oy_i.astype(jnp.float32)
    ox = ox_i.astype(jnp.float32)

    # torchvision _perspective_grid: pixel-center base grid (d = 0.5)
    x = ox + 0.5
    y = oy + 0.5
    den = c6 * x + c7 * y + 1.0
    inv = pl.reciprocal(den, approx=True)      # EUP slot (otherwise idle)
    inv = inv * (2.0 - den * inv)              # one Newton step -> ~f32 accuracy
    gx = (c0 * x + c1 * y + c2) * inv * (2.0 / W) - 1.0
    gy = (c3 * x + c4 * y + c5) * inv * (2.0 / H) - 1.0
    # grid_sample un-normalization, align_corners=False
    sx = ((gx + 1.0) * W - 1.0) * 0.5          # source x per output pixel
    sy = ((gy + 1.0) * H - 1.0) * 0.5          # source y per output pixel

    # Orientation: contraction dim K gets s_k, reduce dim Jp gets s_j.
    s_k, s_j = (sy, sx) if transposed else (sx, sy)

    # ---- factored bilinear tent weights (zeros padding handled implicitly) --
    # (K,1)/(Jp,1) iotas are tiny; the broadcast happens inside the subtract.
    qk = jax.lax.broadcasted_iota(jnp.int32, (K, 1), 0).astype(jnp.float32)
    qj = jax.lax.broadcasted_iota(jnp.int32, (Jp, 1), 0).astype(jnp.float32)
    wk = jnp.maximum(0.0, 1.0 - jnp.abs(s_k - qk))     # (K, TILE_N) f32
    wj = jnp.maximum(0.0, 1.0 - jnp.abs(s_j - qj))     # (Jp, TILE_N) f32

    # ---- stage 1 (MXU): resample along K for every (channel, reduce-row) ----
    a = jnp.dot(img_ref[...], wk.astype(img_ref.dtype),
                preferred_element_type=jnp.float32)     # (R*Jp, TILE_N) f32

    # ---- stage 2 (VALU + XLU sublane reduce; no MXU matmul, no tile copy) ---
    out = (a.reshape(R, Jp, TILE_N) * wj[None, :, :]).sum(axis=1)   # (R, TILE_N)
    out_ref[...] = out.astype(out_ref.dtype)


def _perspective_resample(flat2d, coeffs, *, H, W, R, K, Jp, transposed):
    """flat2d: (R*Jp, K) compute dtype; coeffs: (8,) f32.  Returns (R, HWp) f32."""
    HW = H * W
    RJ = R * Jp
    assert flat2d.shape == (RJ, K)
    in_itemsize = jnp.dtype(flat2d.dtype).itemsize

    cap = _vmem_capacity_bytes()
    budget = int(0.65 * cap)                   # ~83 MiB on 128 MiB parts, ~41 MiB on v7x
    tile_n = _choose_tile_n(HW, RJ, R, K, Jp, in_itemsize, budget)
    HWp = _round_up(HW, tile_n)
    grid = (HWp // tile_n,)

    est = _vmem_estimate(tile_n, RJ, R, K, Jp, in_itemsize)
    vmem_limit = int(min(0.85 * cap, max(32 * 1024 * 1024, 1.5 * est + (2 << 20))))

    # Updated cost: stage-1 MXU matmul + stage-2 elementwise/reduce + weight build.
    flops = int(2 * RJ * K * HWp + 3 * RJ * HWp + 4 * (K + Jp) * HWp)
    bytes_accessed = int(RJ * K * in_itemsize + R * HWp * 4 + 8 * 4)
    cost = pl.CostEstimate(flops=flops, transcendentals=int(HWp),
                           bytes_accessed=bytes_accessed)

    kernel = functools.partial(_perspective_sample_kernel,
                               H=H, W=W, R=R, K=K, Jp=Jp,
                               TILE_N=tile_n, transposed=transposed)
    return pl.pallas_call(
        kernel,
        out_shape=jax.ShapeDtypeStruct((R, HWp), jnp.float32),
        grid=grid,
        in_specs=[
            # 8 perspective coefficients as SMEM scalars.
            pl.BlockSpec(memory_space=pltpu.MemorySpace.SMEM),
            # Full row stack resident in VMEM once (grid-invariant -> no double buffer).
            pl.BlockSpec(memory_space=pltpu.MemorySpace.VMEM),
        ],
        out_specs=pl.BlockSpec((R, tile_n), lambda i: (0, i)),   # lane-dense output tiles
        compiler_params=pltpu.CompilerParams(
            dimension_semantics=("parallel",),
            vmem_limit_bytes=vmem_limit,
        ),
        cost_estimate=cost,
    )(coeffs, flat2d)


# --------------------------------------------------------------------------- #
# Glue: torchvision's coefficient solve + corner sampling (fully traced).
# --------------------------------------------------------------------------- #
def _get_perspective_coeffs(startpoints, endpoints):
    # Mirrors torchvision.transforms.functional._get_perspective_coeffs:
    # solves theta with theta(endpoints[i]) == startpoints[i] (f32 solve).
    x1, y1 = endpoints[:, 0], endpoints[:, 1]      # "p1" in torchvision
    x2, y2 = startpoints[:, 0], startpoints[:, 1]  # "p2" in torchvision
    z = jnp.zeros_like(x1)
    o = jnp.ones_like(x1)
    rows_a = jnp.stack([x1, y1, o, z, z, z, -x2 * x1, -x2 * y1], axis=1)  # (4, 8)
    rows_b = jnp.stack([z, z, z, x1, y1, o, -y2 * x1, -y2 * y1], axis=1)  # (4, 8)
    A = jnp.stack([rows_a, rows_b], axis=1).reshape(8, 8)
    b = startpoints.reshape(8)
    return jnp.linalg.solve(A, b)  # (8,) f32


class Perspective:
    def __init__(self, min_distortion_scale=None, max_distortion_scale=None):
        self.min_distortion_scale = min_distortion_scale
        self.max_distortion_scale = max_distortion_scale
        self._fn = jax.jit(self._forward)   # single dispatch: RNG + solve + kernel

    def get_random_distortion_scale(self, key):
        if self.min_distortion_scale is None or self.max_distortion_scale is None:
            raise ValueError("min_distortion_scale and max_distortion_scale must be provided")
        u = jax.random.uniform(key, (), dtype=jnp.float32)
        return self.min_distortion_scale + u * (self.max_distortion_scale - self.min_distortion_scale)

    @staticmethod
    def get_perspective_params(width, height, distortion_scale, key):
        half_h, half_w = height // 2, width // 2
        ds = jnp.asarray(distortion_scale, jnp.float32)
        dw = jnp.floor(ds * half_w).astype(jnp.int32)
        dh = jnp.floor(ds * half_h).astype(jnp.int32)
        ks = jax.random.split(key, 8)
        tl = jnp.stack([jax.random.randint(ks[0], (), 0, dw + 1),
                        jax.random.randint(ks[1], (), 0, dh + 1)])
        tr = jnp.stack([jax.random.randint(ks[2], (), width - dw - 1, width),
                        jax.random.randint(ks[3], (), 0, dh + 1)])
        br = jnp.stack([jax.random.randint(ks[4], (), width - dw - 1, width),
                        jax.random.randint(ks[5], (), height - dh - 1, height)])
        bl = jnp.stack([jax.random.randint(ks[6], (), 0, dw + 1),
                        jax.random.randint(ks[7], (), height - dh - 1, height)])
        startpoints = jnp.asarray(
            [[0, 0], [width - 1, 0], [width - 1, height - 1], [0, height - 1]], jnp.float32)
        endpoints = jnp.stack([tl, tr, br, bl]).astype(jnp.float32)
        return startpoints, endpoints

    def _forward(self, image, mask, distortion_scale, key):
        N, C, H, W = image.shape
        Nm, Cm, Hm, Wm = mask.shape
        assert (Hm, Wm) == (H, W) and Nm == N

        startpoints, endpoints = self.get_perspective_params(W, H, distortion_scale, key)
        # torchvision F.perspective: coeffs = _get_perspective_coeffs(endpoints, startpoints)
        coeffs = _get_perspective_coeffs(endpoints, startpoints)

        R = N * C + Nm * Cm

        # bf16 MXU operands, f32 accumulation (weights built in f32).
        # ~1e-3 relative error on image values vs torchvision f32; masks exact.
        cdt = jnp.bfloat16

        # Orientation: let the MXU contraction run over the larger spatial dim.
        transposed = H > W
        if transposed:
            J, K = W, H
            img4 = image.astype(cdt).transpose(0, 1, 3, 2)   # (N, C, W, H)
            msk4 = mask.astype(cdt).transpose(0, 1, 3, 2)
        else:
            J, K = H, W
            img4 = image.astype(cdt)
            msk4 = mask.astype(cdt)

        # Pad the per-channel reduce dim to a sublane multiple so the in-kernel
        # (R*Jp, T) -> (R, Jp, T) reshape is tile-aligned (pad rows are zero and
        # contribute nothing -- same as grid_sample's zeros padding).
        Jp = _round_up(J, 8)
        if Jp != J:
            img4 = jnp.pad(img4, ((0, 0), (0, 0), (0, Jp - J), (0, 0)))
            msk4 = jnp.pad(msk4, ((0, 0), (0, 0), (0, Jp - J), (0, 0)))
        flat = jnp.concatenate([img4.reshape(N * C * Jp, K),
                                msk4.reshape(Nm * Cm * Jp, K)], axis=0)   # (R*Jp, K)

        out = _perspective_resample(flat, coeffs, H=H, W=W, R=R, K=K, Jp=Jp,
                                    transposed=transposed)                # (R, HWp) f32
        out = out[:, : H * W]
        img_out = out[: N * C].reshape(N, C, H, W).astype(image.dtype)
        msk_out = out[N * C: R].reshape(Nm, Cm, H, W).astype(mask.dtype)
        return img_out, msk_out

    def __call__(self, image, mask, distortion_scale=None, key=None):
        if key is None:
            key = jax.random.PRNGKey(0)
        if distortion_scale is None:
            k_ds, key = jax.random.split(key)
            distortion_scale = self.get_random_distortion_scale(k_ds)
        ds = jnp.asarray(distortion_scale, jnp.float32)
        return self._fn(image, mask, ds, key)


if __name__ == "__main__":
    key = jax.random.PRNGKey(0)
    k_img, k_mask, k_pts = jax.random.split(key, 3)

    N, C, H, W = 2, 4, 16, 16
    image = jax.random.normal(k_img, (N, C, H, W), dtype=jnp.float32)
    mask = (jax.random.uniform(k_mask, (N, 1, H, W)) > 0.5).astype(jnp.float32)

    module = Perspective(min_distortion_scale=0.1, max_distortion_scale=0.5)
    img_out, mask_out = module(image, mask, distortion_scale=0.3, key=k_pts)
    jax.block_until_ready((img_out, mask_out))

    assert img_out.shape == image.shape and img_out.dtype == image.dtype
    assert mask_out.shape == mask.shape and mask_out.dtype == mask.dtype
    assert bool(jnp.all(jnp.isfinite(img_out))) and bool(jnp.all(jnp.isfinite(mask_out)))
    print("KERNEL_OK")
</pallas_src>

<mosaic_0001>
module attributes {stable_mosaic.version = 11 : i64} {
  func.func @_perspective_sample_kernel(%arg0: i32, %arg1: memref<8xf32, #tpu.memory_space<smem>>, %arg2: memref<160x16xbf16, #tpu.memory_space<vmem>>, %arg3: memref<10x128xf32, #tpu.memory_space<vmem>>) attributes {dimension_semantics = [#tpu.dimension_semantics<parallel>], iteration_bounds = array<i64: 2>, scalar_prefetch = 0 : i64, scratch_operands = 0 : i64, tpu.core_type = #tpu.core_type<tc>, window_params = [{transform_indices = @transform_0, window_bounds = array<i64: 8>}, {pipeline_mode = #tpu.pipeline_mode<synchronous>, transform_indices = @transform_1, window_bounds = array<i64: 160, 16>}, {transform_indices = @transform_2, window_bounds = array<i64: 10, 128>}]} {
    %c0 = arith.constant 0 : index
    %0 = memref.load %arg1[%c0] : memref<8xf32, #tpu.memory_space<smem>>
    %c1 = arith.constant 1 : index
    %1 = memref.load %arg1[%c1] : memref<8xf32, #tpu.memory_space<smem>>
    %c2 = arith.constant 2 : index
    %2 = memref.load %arg1[%c2] : memref<8xf32, #tpu.memory_space<smem>>
    %c3 = arith.constant 3 : index
    %3 = memref.load %arg1[%c3] : memref<8xf32, #tpu.memory_space<smem>>
    %c4 = arith.constant 4 : index
    %4 = memref.load %arg1[%c4] : memref<8xf32, #tpu.memory_space<smem>>
    %c5 = arith.constant 5 : index
    %5 = memref.load %arg1[%c5] : memref<8xf32, #tpu.memory_space<smem>>
    %c6 = arith.constant 6 : index
    %6 = memref.load %arg1[%c6] : memref<8xf32, #tpu.memory_space<smem>>
    %c7 = arith.constant 7 : index
    %7 = memref.load %arg1[%c7] : memref<8xf32, #tpu.memory_space<smem>>
    %c128_i32 = arith.constant 128 : i32
    %8 = arith.muli %arg0, %c128_i32 : i32
    %9 = tpu.iota {dimensions = array<i32: 1>} : vector<1x128xi32>
    %10 = vector.broadcast %8 : i32 to vector<1x128xi32>
    %11 = arith.addi %10, %9 : vector<1x128xi32>
    %c255_i32 = arith.constant 255 : i32
    %12 = vector.broadcast %c255_i32 : i32 to vector<1x128xi32>
    %13 = arith.minsi %11, %12 : vector<1x128xi32>
    %c4_i32 = arith.constant 4 : i32
    %14 = vector.broadcast %c4_i32 : i32 to vector<1x128xi32>
    %15 = arith.shrsi %13, %14 : vector<1x128xi32>
    %c15_i32 = arith.constant 15 : i32
    %16 = vector.broadcast %c15_i32 : i32 to vector<1x128xi32>
    %17 = arith.andi %13, %16 : vector<1x128xi32>
    %18 = arith.sitofp %15 : vector<1x128xi32> to vector<1x128xf32>
    %19 = arith.sitofp %17 : vector<1x128xi32> to vector<1x128xf32>
    %cst = arith.constant 5.000000e-01 : f32
    %20 = vector.broadcast %cst : f32 to vector<1x128xf32>
    %21 = arith.addf %19, %20 : vector<1x128xf32>
    %cst_0 = arith.constant 5.000000e-01 : f32
    %22 = vector.broadcast %cst_0 : f32 to vector<1x128xf32>
    %23 = arith.addf %18, %22 : vector<1x128xf32>
    %24 = vector.broadcast %6 : f32 to vector<1x128xf32>
    %25 = arith.mulf %24, %21 : vector<1x128xf32>
    %26 = vector.broadcast %7 : f32 to vector<1x128xf32>
    %27 = arith.mulf %26, %23 : vector<1x128xf32>
    %28 = arith.addf %25, %27 : vector<1x128xf32>
    %cst_1 = arith.constant 1.000000e+00 : f32
    %29 = vector.broadcast %cst_1 : f32 to vector<1x128xf32>
    %30 = arith.addf %28, %29 : vector<1x128xf32>
    %31 = tpu.reciprocal %30 {approx = true} : vector<1x128xf32> -> vector<1x128xf32>
    %32 = arith.mulf %30, %31 : vector<1x128xf32>
    %cst_2 = arith.constant 2.000000e+00 : f32
    %33 = vector.broadcast %cst_2 : f32 to vector<1x128xf32>
    %34 = arith.subf %33, %32 : vector<1x128xf32>
    %35 = arith.mulf %31, %34 : vector<1x128xf32>
    %36 = vector.broadcast %0 : f32 to vector<1x128xf32>
    %37 = arith.mulf %36, %21 : vector<1x128xf32>
    %38 = vector.broadcast %1 : f32 to vector<1x128xf32>
    %39 = arith.mulf %38, %23 : vector<1x128xf32>
    %40 = arith.addf %37, %39 : vector<1x128xf32>
    %41 = vector.broadcast %2 : f32 to vector<1x128xf32>
    %42 = arith.addf %40, %41 : vector<1x128xf32>
    %43 = arith.mulf %42, %35 : vector<1x128xf32>
    %cst_3 = arith.constant 1.250000e-01 : f32
    %44 = vector.broadcast %cst_3 : f32 to vector<1x128xf32>
    %45 = arith.mulf %43, %44 : vector<1x128xf32>
    %cst_4 = arith.constant 1.000000e+00 : f32
    %46 = vector.broadcast %cst_4 : f32 to vector<1x128xf32>
    %47 = arith.subf %45, %46 : vector<1x128xf32>
    %48 = vector.broadcast %3 : f32 to vector<1x128xf32>
    %49 = arith.mulf %48, %21 : vector<1x128xf32>
    %50 = vector.broadcast %4 : f32 to vector<1x128xf32>
    %51 = arith.mulf %50, %23 : vector<1x128xf32>
    %52 = arith.addf %49, %51 : vector<1x128xf32>
    %53 = vector.broadcast %5 : f32 to vector<1x128xf32>
    %54 = arith.addf %52, %53 : vector<1x128xf32>
    %55 = arith.mulf %54, %35 : vector<1x128xf32>
    %cst_5 = arith.constant 1.250000e-01 : f32
    %56 = vector.broadcast %cst_5 : f32 to vector<1x128xf32>
    %57 = arith.mulf %55, %56 : vector<1x128xf32>
    %cst_6 = arith.constant 1.000000e+00 : f32
    %58 = vector.broadcast %cst_6 : f32 to vector<1x128xf32>
    %59 = arith.subf %57, %58 : vector<1x128xf32>
    %cst_7 = arith.constant 1.000000e+00 : f32
    %60 = vector.broadcast %cst_7 : f32 to vector<1x128xf32>
    %61 = arith.addf %47, %60 : vector<1x128xf32>
    %cst_8 = arith.constant 1.600000e+01 : f32
    %62 = vector.broadcast %cst_8 : f32 to vector<1x128xf32>
    %63 = arith.mulf %61, %62 : vector<1x128xf32>
    %cst_9 = arith.constant 1.000000e+00 : f32
    %64 = vector.broadcast %cst_9 : f32 to vector<1x128xf32>
    %65 = arith.subf %63, %64 : vector<1x128xf32>
    %cst_10 = arith.constant 5.000000e-01 : f32
    %66 = vector.broadcast %cst_10 : f32 to vector<1x128xf32>
    %67 = arith.mulf %65, %66 : vector<1x128xf32>
    %cst_11 = arith.constant 1.000000e+00 : f32
    %68 = vector.broadcast %cst_11 : f32 to vector<1x128xf32>
    %69 = arith.addf %59, %68 : vector<1x128xf32>
    %cst_12 = arith.constant 1.600000e+01 : f32
    %70 = vector.broadcast %cst_12 : f32 to vector<1x128xf32>
    %71 = arith.mulf %69, %70 : vector<1x128xf32>
    %cst_13 = arith.constant 1.000000e+00 : f32
    %72 = vector.broadcast %cst_13 : f32 to vector<1x128xf32>
    %73 = arith.subf %71, %72 : vector<1x128xf32>
    %cst_14 = arith.constant 5.000000e-01 : f32
    %74 = vector.broadcast %cst_14 : f32 to vector<1x128xf32>
    %75 = arith.mulf %73, %74 : vector<1x128xf32>
    %76 = tpu.iota {dimensions = array<i32: 0>} : vector<16x1xi32>
    %77 = arith.sitofp %76 : vector<16x1xi32> to vector<16x1xf32>
    %78 = tpu.iota {dimensions = array<i32: 0>} : vector<16x1xi32>
    %79 = arith.sitofp %78 : vector<16x1xi32> to vector<16x1xf32>
    %80 = vector.broadcast %67 : vector<1x128xf32> to vector<16x128xf32>
    %81 = vector.broadcast %77 : vector<16x1xf32> to vector<16x128xf32>
    %82 = arith.subf %80, %81 : vector<16x128xf32>
    %83 = math.absf %82 : vector<16x128xf32>
    %cst_15 = arith.constant 1.000000e+00 : f32
    %84 = vector.broadcast %cst_15 : f32 to vector<16x128xf32>
    %85 = arith.subf %84, %83 : vector<16x128xf32>
    %cst_16 = arith.constant 0.000000e+00 : f32
    %86 = vector.broadcast %cst_16 : f32 to vector<16x128xf32>
    %87 = arith.maximumf %86, %85 : vector<16x128xf32>
    %88 = vector.broadcast %75 : vector<1x128xf32> to vector<16x128xf32>
    %89 = vector.broadcast %79 : vector<16x1xf32> to vector<16x128xf32>
    %90 = arith.subf %88, %89 : vector<16x128xf32>
    %91 = math.absf %90 : vector<16x128xf32>
    %cst_17 = arith.constant 1.000000e+00 : f32
    %92 = vector.broadcast %cst_17 : f32 to vector<16x128xf32>
    %93 = arith.subf %92, %91 : vector<16x128xf32>
    %cst_18 = arith.constant 0.000000e+00 : f32
    %94 = vector.broadcast %cst_18 : f32 to vector<16x128xf32>
    %95 = arith.maximumf %94, %93 : vector<16x128xf32>
    %c0_19 = arith.constant 0 : index
    %c0_20 = arith.constant 0 : index
    %96 = vector.load %arg2[%c0_19, %c0_20] : memref<160x16xbf16, #tpu.memory_space<vmem>>, vector<160x16xbf16>
    %97 = arith.truncf %87 : vector<16x128xf32> to vector<16x128xbf16>
    %cst_21 = arith.constant dense<0.000000e+00> : vector<160x128xf32>
    %98 = tpu.matmul %96, %97, %cst_21 {dimension_numbers = #tpu.dot_dimension_numbers<[1], [0], [0], [1], [0, 0, 1, 1], [], []>} : vector<160x16xbf16>, vector<16x128xbf16>, vector<160x128xf32> -> vector<160x128xf32>
    %99 = vector.shape_cast %98 : vector<160x128xf32> to vector<10x16x128xf32>
    %100 = vector.shape_cast %95 : vector<16x128xf32> to vector<1x16x128xf32>
    %101 = vector.broadcast %100 : vector<1x16x128xf32> to vector<10x16x128xf32>
    %102 = arith.mulf %99, %101 : vector<10x16x128xf32>
    %cst_22 = arith.constant dense<0.000000e+00> : vector<10x128xf32>
    %103 = vector.multi_reduction <add>, %102, %cst_22 [1] : vector<10x16x128xf32> to vector<10x128xf32>
    %c0_23 = arith.constant 0 : index
    %c0_24 = arith.constant 0 : index
    %104 = vector.load %arg3[%c0_23, %c0_24] : memref<10x128xf32, #tpu.memory_space<vmem>>, vector<10x128xf32>
    tpu.vector_store %arg3[%c0_23, %c0_24], %103 {strides = array<i32>} : memref<10x128xf32, #tpu.memory_space<vmem>>, vector<10x128xf32>,
    return
  }
  func.func @transform_0(%arg0: i32) -> i32 {
    %c0_i32 = arith.constant 0 : i32
    %c0_i32_0 = arith.constant 0 : i32
    return %c0_i32 : i32
  }
  func.func @transform_1(%arg0: i32) -> (i32, i32) {
    %c0_i32 = arith.constant 0 : i32
    %c0_i32_0 = arith.constant 0 : i32
    %c0_i32_1 = arith.constant 0 : i32
    return %c0_i32, %c0_i32_0 : i32, i32
  }
  func.func @transform_2(%arg0: i32) -> (i32, i32) {
    %c0_i32 = arith.constant 0 : i32
    %c0_i32_0 = arith.constant 0 : i32
    return %c0_i32, %arg0 : i32, i32
  }
}

</mosaic_0001>

<llo_original>
// kernel: custom-call.8
$region0: #{custom-call.8}
  %s0 = inlined_call_operand.vmem [shape: f32[8,8], index: 0, kind: input, shape index: {}]
  %s1 = inlined_call_operand.vmem [shape: f32[8,8], index: 1, kind: output, shape index: {0}]
  %s2 = inlined_call_operand.hbm [shape: s32[8], index: 2, kind: output, shape index: {1}]
  %s3 = inlined_call_operand.vmem [shape: s32[8], index: 3, kind: output, shape index: {2}]
  %4 = xla_tuple %s1, %s2, %s3
  $region1: #{custom-call.8} parent=0
    #allocation0 [shape = 'u8[4096]{0}', space=vmem, size = 0x1000, scoped, tag = 'operand span for operand 0']
    #allocation1 [shape = 'u8[4096]{0}', space=vmem, size = 0x1000, scoped, tag = 'operand span for operand 1']
    #allocation2 [shape = 'u8[4096]{0}', space=vmem, size = 0x1000, scoped, tag = 'operand span for operand 2']
    #allocation3 [shape = 'u8[512]{0}', space=vmem, size = 0x400, scoped, tag = 'packed  for operand 2']
    #allocation4 [shape = 's32[1]{0}', space=sflag, size = 0x4, scoped, tag = 'scoped memory for custom-call.8']
    #allocation5 [shape = 'u8[4096]{0}', space=vmem, size = 0x1000, scoped, tag = 'operand span for operand 3']
    #allocation6 [shape = 'u8[512]{0}', space=vmem, size = 0x400, scoped, tag = 'packed  for operand 3']
    #allocation7 [shape = 's32[8,128]{1,0}', space=vmem, size = 0x1000, scoped, tag = 'scratch for permutations']
    %5 = vsyncpa [#allocation4], 0
    %p7 = scmp.gt.s32.totalorder 8, 0
    // Predicated region
    $region2: #{custom-call.8} parent=1 // pred_check
      %p8 = pneg %p7
    $region3: #{custom-call.8} parent=1 // pred_check_branch
      %10 = sbr.rel (%p8) target = $region5
    $region4: #{custom-call.8} parent=1 // pred_region
      %s11 = sshra.s32 8, 3
      %p12 = scmp.gt.s32.totalorder %s11, 0
      // Predicated region
      $region6: #{custom-call.8} parent=4 // pred_check
        %p13 = pneg %p12
      $region7: #{custom-call.8} parent=4 // pred_check_branch
        %15 = sbr.rel (%p13) target = $region9
      $region8: #{custom-call.8} parent=4 // pred_region
        %s16 = ssub.s32 %s11, 1
        %s17 = smul.u32 %s16, 128
        %s18 = sshra.s32 %s17, 4
        %s19 = scalar_lea.vmem %s0, %s18
        %v20 = vld [vmem:[%s0] sm:$0xff]
        // While loop
        $region10: #{custom-call.8} parent=8 // loop_pre_header
          _
        $region11: #{custom-call.8} parent=8 // loop_header
          %s21 = sphi %s0, %s43
          %s22 = sphi [#allocation0], %s44
          %v23 = vphi %v20, %v45
          %s24 = ssub.s32 %s19, 64
          %p25 = scmp.gt.s32.totalorder %s21, %s24
        $region12: #{custom-call.8} parent=8 // loop_header_branch
          %27 = sbr.rel (%p25) target = $region16
        $region13: #{custom-call.8} parent=8 // loop_body
          %28 = vst [vmem:[%s22] sm:$0xff] %v23
          %v29 = vld [vmem:[%s21 + $0x8] sm:$0xff]
          %30 = vst [vmem:[%s22 + $0x8] sm:$0xff] %v29
          %v31 = vld [vmem:[%s21 + $0x10] sm:$0xff]
          %32 = vst [vmem:[%s22 + $0x10] sm:$0xff] %v31
          %v33 = vld [vmem:[%s21 + $0x18] sm:$0xff]
          %34 = vst [vmem:[%s22 + $0x18] sm:$0xff] %v33
          %v35 = vld [vmem:[%s21 + $0x20] sm:$0xff]
          %36 = vst [vmem:[%s22 + $0x20] sm:$0xff] %v35
          %v37 = vld [vmem:[%s21 + $0x28] sm:$0xff]
          %38 = vst [vmem:[%s22 + $0x28] sm:$0xff] %v37
          %v39 = vld [vmem:[%s21 + $0x30] sm:$0xff]
          %40 = vst [vmem:[%s22 + $0x30] sm:$0xff] %v39
          %v41 = vld [vmem:[%s21 + $0x38] sm:$0xff]
          %42 = vst [vmem:[%s22 + $0x38] sm:$0xff] %v41
        $region14: #{custom-call.8} parent=8 // loop_footer
          %s43 = scalar_lea.vmem %s21, 64
          %s44 = scalar_lea.vmem %s22, 64
          %v45 = vld [vmem:[%s21 + $0x40] sm:$0xff]
        $region15: #{custom-call.8} parent=8 // loop_footer_branch
          %46 = sbr.rel target = $region11
        $region16: #{custom-call.8} parent=8 // loop_exit
          _
        // While loop
        $region17: #{custom-call.8} parent=8 // loop_pre_header
          _
        $region18: #{custom-call.8} parent=8 // loop_header
          %s47 = sphi %s21, %s55
          %s48 = sphi %s22, %s56
          %v49 = vphi %v23, %v49
          %p50 = scmp.gt.s32.totalorder %s47, %s19
        $region19: #{custom-call.8} parent=8 // loop_header_branch
          %52 = sbr.rel (%p50) target = $region23
        $region20: #{custom-call.8} parent=8 // loop_body
          %v53 = vld [vmem:[%s47] sm:$0xff]
          %54 = vst [vmem:[%s48] sm:$0xff] %v53
        $region21: #{custom-call.8} parent=8 // loop_footer
          %s55 = scalar_lea.vmem %s47, 8
          %s56 = scalar_lea.vmem %s48, 8
        $region22: #{custom-call.8} parent=8 // loop_footer_branch
          %57 = sbr.rel target = $region18
        $region23: #{custom-call.8} parent=8 // loop_exit
          _
      $region9: #{custom-call.8} parent=4 // pred_fallthru
        _
      %s58 = sand.u32 8, 7
      %s59 = sshllo.u32 0, %s58
      %s60 = smul.u32 %s11, 128
      %s61 = sshra.s32 %s60, 4
      %s62 = scalar_lea.vmem [#allocation0], %s61
      %s63 = smul.u32 %s11, 128
      %s64 = sshra.s32 %s63, 4
      %s65 = scalar_lea.vmem %s0, %s64
      %v66 = vld [vmem:[%s65] sm:%s59]
      %67 = vst [vmem:[%s62] sm:%s59] %v66
    $region5: #{custom-call.8} parent=1 // pred_fallthru
      _
    %v68 = vld [vmem:[#allocation0] sm:$0xff]
    %69 = vst [vmem:[#allocation1] sm:$0xff] %v68
    %70 = vst [vmem:[#allocation2] sm:$0x1] 0
    %v71 = vlaneseq
    %v72 = vshrl.u32 %v71, 7
    %v73 = vmov %v72
    %75 = vst [vmem:[#allocation7] sm:$0xff] %v73
    loop: start=0, step=1, limit=8
    $region25: #{custom-call.8} parent=1 // loop_pre_header
      _
    $region26: #{custom-call.8} parent=1 // loop_header
      %s77 = sphi 0, %s81
      %p78 = scmp.ge.s32.totalorder %s77, 8
    $region27: #{custom-call.8} parent=1 // loop_header_branch
      %80 = sbr.rel (%p78) target = $region31
    $region28: #{custom-call.8} parent=1 // loop_body
      %v82 = vstv %s77
      %v83 = vlaneseq
      %v84 = vshrl.u32 %v83, 7
      %v85 = vmov %v84
      %v86 = vld [vmem:[#allocation1] sm:$0xff]
      %v87 = vand.u32 2147483647, %v86
      %v89 = vstv %s77
      %vm90 = vcmp.ge.s32.totalorder %v85, %v89
      %vm91 = vcmp.lt.s32.totalorder %v85, 8
      %vm92 = vmand %vm90, %vm91
      %vm93 = vcmp.lt.f32.partialorder -inf, %v87
      %vm94 = vmand %vm92, %vm93
      %v95 = vsel %vm94, %v85, %v82
      %v96 = vsel %vm94, %v87, -inf
      %v97 = vrot.slane %v96, 1
      %v98 = vrot.slane %v95, 1
      %vm99 = vcmp.ge.f32.partialorder %v97, %v96
      %v100 = vsel %vm99, %v97, %v96
      %v101 = vsel %vm99, %v98, %v95
      %v102 = vrot.slane %v97, 1
      %v103 = vrot.slane %v98, 1
      %vm104 = vcmp.ge.f32.partialorder %v102, %v100
      %v105 = vsel %vm104, %v102, %v100
      %v106 = vsel %vm104, %v103, %v101
      %v107 = vrot.slane %v102, 1
      %v108 = vrot.slane %v103, 1
      %vm109 = vcmp.ge.f32.partialorder %v107, %v105
      %v110 = vsel %vm109, %v107, %v105
      %v111 = vsel %vm109, %v108, %v106
      %v112 = vrot.slane %v107, 1
      %v113 = vrot.slane %v108, 1
      %vm114 = vcmp.ge.f32.partialorder %v112, %v110
      %v115 = vsel %vm114, %v112, %v110
      %v116 = vsel %vm114, %v113, %v111
      %v117 = vrot.slane %v112, 1
      %v118 = vrot.slane %v113, 1
      %vm119 = vcmp.ge.f32.partialorder %v117, %v115
      %v120 = vsel %vm119, %v117, %v115
      %v121 = vsel %vm119, %v118, %v116
      %v122 = vrot.slane %v117, 1
      %v123 = vrot.slane %v118, 1
      %vm124 = vcmp.ge.f32.partialorder %v122, %v120
      %v125 = vsel %vm124, %v122, %v120
      %v126 = vsel %vm124, %v123, %v121
      %v127 = vrot.slane %v122, 1
      %v128 = vrot.slane %v123, 1
      %vm129 = vcmp.ge.f32.partialorder %v127, %v125
      %v130 = vsel %vm129, %v127, %v125
      %v131 = vsel %vm129, %v128, %v126
      %s132 = ssub.s32 128, %s77
      %133 = vrot.lane.b32.xlu0 %v131, %s132
      %v134 = vpop.permute.xlu0 %133
      %s135 = vtos %v134
      %v136 = vstv %s77
      %v137 = vlaneseq
      %v138 = vand.u32 %v137, 127
      %vm139 = vcmp.eq.s32.totalorder %v138, %v136
      %v140 = vstv %s135
      %v141 = vld [vmem:[#allocation2] ss:$0 sm:$0xff]
      %v142 = vsel %vm139, %v140, %v141
      %143 = vst [vmem:[#allocation2] sm:$0x1] %v142
      %s144 = scalar_lea.vmem [#allocation1], %s77
      %s145 = scalar_lea.vmem [#allocation1], %s135
      %v146 = vld [vmem:[%s144] ss:$0 sm:$0xff]
      %v147 = vld [vmem:[%s145] ss:$0 sm:$0xff]
      %148 = vst [vmem:[%s145] sm:$0x1] %v146
      %149 = vst [vmem:[%s144] sm:$0x1] %v147
      %s150 = scalar_lea.vmem [#allocation7], %s77
      %s151 = scalar_lea.vmem [#allocation7], %s135
      %v152 = vld [vmem:[%s150] ss:$0 sm:$0xff]
      %v153 = vld [vmem:[%s151] ss:$0 sm:$0xff]
      %154 = vst [vmem:[%s151] sm:$0x1] %v152
      %155 = vst [vmem:[%s150] sm:$0x1] %v153
      %vm156 = vcmp.ne.f32.partialorder %v147, 0.0
      %vm157 = vmand %vm139, %vm156
      %v158 = vsel %vm157, %v147, 1.0
      %v159 = vlaneseq
      %v160 = vand.u32 %v159, 127
      %v161 = vstv %s77
      %vm162 = vcmp.gt.s32.totalorder %v160, %v161
      %v163 = vsel %vm162, %v147, 0.0
      %v164 = vlaneseq
      %v165 = vshrl.u32 %v164, 7
      %v166 = vmov %v165
      %v167 = vld [vmem:[#allocation1] sm:$0xff]
      %v169 = vstv %s77
      %vm170 = vcmp.gt.s32.totalorder %v166, %v169
      %v171 = vsel %vm170, %v158, 1.0
      %v172 = vrcp.pop %v171
      %v173 = vmul.f32 %v167, %v172
      %vm174 = vmand %vm170, %vm139
      %v175 = vsel %vm174, %v173, 0.0
      %176 = vadd.xlane.f32.xlu0 %v175
      %v177 = vpop.xlane.xlu0 %176
      %v178 = vmul.f32 %v177, %v163
      %v179 = vsub.f32 %v173, %v178
      %180 = vst [vmem:[#allocation1] sm:$0xff] %v179
    $region29: #{custom-call.8} parent=1 // loop_footer
      %s81 = sadd.s32 1, %s77
    $region30: #{custom-call.8} parent=1 // loop_footer_branch
      %76 = sbr.rel target = $region26
    $region31: #{custom-call.8} parent=1 // loop_exit
      _
    %v181 = vld [vmem:[#allocation7] sm:$0xff]
    %s182 = scalar_lea.vmem [#allocation7], 8
    %s183 = scalar_lea.vmem [#allocation7], 16
    %s184 = scalar_lea.vmem [#allocation7], 24
    %s185 = scalar_lea.vmem [#allocation7], 32
    %s186 = scalar_lea.vmem [#allocation7], 40
    %s187 = scalar_lea.vmem [#allocation7], 48
    %s188 = scalar_lea.vmem [#allocation7], 56
    %s189 = scalar_lea.vmem [#allocation7], 64
    %s190 = scalar_lea.vmem [#allocation7], 72
    %s191 = scalar_lea.vmem [#allocation7], 80
    %s192 = scalar_lea.vmem [#allocation7], 88
    %s193 = scalar_lea.vmem [#allocation7], 96
    %s194 = scalar_lea.vmem [#allocation7], 104
    %s195 = scalar_lea.vmem [#allocation7], 112
    %s196 = scalar_lea.vmem [#allocation7], 120
    %197 = vxpose.xlu0.b32.start [1/16] %v181, 128
    %198 = vxpose.xlu0.b32.cont [2/16] 0, 128
    %199 = vxpose.xlu0.b32.cont [3/16] 0, 128
    %200 = vxpose.xlu0.b32.cont [4/16] 0, 128
    %201 = vxpose.xlu0.b32.cont [5/16] 0, 128
    %202 = vxpose.xlu0.b32.cont [6/16] 0, 128
    %203 = vxpose.xlu0.b32.cont [7/16] 0, 128
    %204 = vxpose.xlu0.b32.cont [8/16] 0, 128
    %205 = vxpose.xlu0.b32.cont [9/16] 0, 128
    %206 = vxpose.xlu0.b32.cont [10/16] 0, 128
    %207 = vxpose.xlu0.b32.cont [11/16] 0, 128
    %208 = vxpose.xlu0.b32.cont [12/16] 0, 128
    %209 = vxpose.xlu0.b32.cont [13/16] 0, 128
    %210 = vxpose.xlu0.b32.cont [14/16] 0, 128
    %211 = vxpose.xlu0.b32.cont [15/16] 0, 128
    %212 = vxpose.xlu0.b32.end [16/16] 0, 128
    %v213 = vpop.trf.xlu0
    %v214 = vpop.trf.xlu0
    %v215 = vpop.trf.xlu0
    %v216 = vpop.trf.xlu0
    %v217 = vpop.trf.xlu0
    %v218 = vpop.trf.xlu0
    %v219 = vpop.trf.xlu0
    %v220 = vpop.trf.xlu0
    %v221 = vpop.trf.xlu0
    %v222 = vpop.trf.xlu0
    %v223 = vpop.trf.xlu0
    %v224 = vpop.trf.xlu0
    %v225 = vpop.trf.xlu0
    %v226 = vpop.trf.xlu0
    %v227 = vpop.trf.xlu0
    %v228 = vpop.trf.xlu0
    %229 = vst [vmem:[#allocation5] sm:$0x1] %v213
    %s231 = sshllo.u32 0, 1
    %v233 = vld [vmem:[#allocation2] sm:%s231]
    %s234 = sshllo.u32 0, 1
    %235 = vst [vmem:[#allocation3] sm:%s234] %v233
    %s237 = sshllo.u32 0, 1
    %v239 = vld [vmem:[#allocation5] sm:%s237]
    %s240 = sshllo.u32 0, 1
    %241 = vst [vmem:[#allocation6] sm:%s240] %v239
    %p243 = scmp.gt.s32.totalorder 8, 0
    // Predicated region
    $region32: #{custom-call.8} parent=1 // pred_check
      %p244 = pneg %p243
    $region33: #{custom-call.8} parent=1 // pred_check_branch
      %246 = sbr.rel (%p244) target = $region35
    $region34: #{custom-call.8} parent=1 // pred_region
      %s247 = sshra.s32 8, 3
      %p248 = scmp.gt.s32.totalorder %s247, 0
      // Predicated region
      $region36: #{custom-call.8} parent=34 // pred_check
        %p249 = pneg %p248
      $region37: #{custom-call.8} parent=34 // pred_check_branch
        %251 = sbr.rel (%p249) target = $region39
      $region38: #{custom-call.8} parent=34 // pred_region
        %s252 = ssub.s32 %s247, 1
        %s253 = smul.u32 %s252, 128
        %s254 = sshra.s32 %s253, 4
        %s255 = scalar_lea.vmem [#allocation1], %s254
        %v256 = vld [vmem:[#allocation1] sm:$0xff]
        // While loop
        $region40: #{custom-call.8} parent=38 // loop_pre_header
          _
        $region41: #{custom-call.8} parent=38 // loop_header
          %s257 = sphi [#allocation1], %s279
          %s258 = sphi %s1, %s280
          %v259 = vphi %v256, %v281
          %s260 = ssub.s32 %s255, 64
          %p261 = scmp.gt.s32.totalorder %s257, %s260
        $region42: #{custom-call.8} parent=38 // loop_header_branch
          %263 = sbr.rel (%p261) target = $region46
        $region43: #{custom-call.8} parent=38 // loop_body
          %264 = vst [vmem:[%s258] sm:$0xff] %v259
          %v265 = vld [vmem:[%s257 + $0x8] sm:$0xff]
          %266 = vst [vmem:[%s258 + $0x8] sm:$0xff] %v265
          %v267 = vld [vmem:[%s257 + $0x10] sm:$0xff]
          %268 = vst [vmem:[%s258 + $0x10] sm:$0xff] %v267
          %v269 = vld [vmem:[%s257 + $0x18] sm:$0xff]
          %270 = vst [vmem:[%s258 + $0x18] sm:$0xff] %v269
          %v271 = vld [vmem:[%s257 + $0x20] sm:$0xff]
          %272 = vst [vmem:[%s258 + $0x20] sm:$0xff] %v271
          %v273 = vld [vmem:[%s257 + $0x28] sm:$0xff]
          %274 = vst [vmem:[%s258 + $0x28] sm:$0xff] %v273
          %v275 = vld [vmem:[%s257 + $0x30] sm:$0xff]
          %276 = vst [vmem:[%s258 + $0x30] sm:$0xff] %v275
          %v277 = vld [vmem:[%s257 + $0x38] sm:$0xff]
          %278 = vst [vmem:[%s258 + $0x38] sm:$0xff] %v277
        $region44: #{custom-call.8} parent=38 // loop_footer
          %s279 = scalar_lea.vmem %s257, 64
          %s280 = scalar_lea.vmem %s258, 64
          %v281 = vld [vmem:[%s257 + $0x40] sm:$0xff]
        $region45: #{custom-call.8} parent=38 // loop_footer_branch
          %282 = sbr.rel target = $region41
        $region46: #{custom-call.8} parent=38 // loop_exit
          _
        // While loop
        $region47: #{custom-call.8} parent=38 // loop_pre_header
          _
        $region48: #{custom-call.8} parent=38 // loop_header
          %s283 = sphi %s257, %s291
          %s284 = sphi %s258, %s292
          %v285 = vphi %v259, %v285
          %p286 = scmp.gt.s32.totalorder %s283, %s255
        $region49: #{custom-call.8} parent=38 // loop_header_branch
          %288 = sbr.rel (%p286) target = $region53
        $region50: #{custom-call.8} parent=38 // loop_body
          %v289 = vld [vmem:[%s283] sm:$0xff]
          %290 = vst [vmem:[%s284] sm:$0xff] %v289
        $region51: #{custom-call.8} parent=38 // loop_footer
          %s291 = scalar_lea.vmem %s283, 8
          %s292 = scalar_lea.vmem %s284, 8
        $region52: #{custom-call.8} parent=38 // loop_footer_branch
          %293 = sbr.rel target = $region48
        $region53: #{custom-call.8} parent=38 // loop_exit
          _
      $region39: #{custom-call.8} parent=34 // pred_fallthru
        _
      %s294 = sand.u32 8, 7
      %s295 = sshllo.u32 0, %s294
      %s296 = smul.u32 %s247, 128
      %s297 = sshra.s32 %s296, 4
      %s298 = scalar_lea.vmem %s1, %s297
      %s299 = smul.u32 %s247, 128
      %s300 = sshra.s32 %s299, 4
      %s301 = scalar_lea.vmem [#allocation1], %s300
      %v302 = vld [vmem:[%s301] sm:%s295]
      %303 = vst [vmem:[%s298] sm:%s295] %v302
    $region35: #{custom-call.8} parent=1 // pred_fallthru
      _
    // Predicated region
    $region54: #{custom-call.8} parent=1 // pred_check
      _
    $region55: #{custom-call.8} parent=1 // pred_check_branch
      %305 = sbr.rel (0) target = $region57
    $region56: #{custom-call.8} parent=1 // pred_region
      %s307 = ssub.s32 16, 16
      %308 = vsyncadd [#allocation4], %s307
      %s309 = sshll.u32 [#allocation3], 4
      %s310 = int_to_ptr.vmem [resolvable:$true] %s309
      %312 = dma.vmem_to_hbm [thread:$0]  %s310, 16, %s2, [#allocation4]
    $region57: #{custom-call.8} parent=1 // pred_fallthru
      _
    // Predicated region
    $region58: #{custom-call.8} parent=1 // pred_check
      _
    $region59: #{custom-call.8} parent=1 // pred_check_branch
      %314 = sbr.rel (0) target = $region61
    $region60: #{custom-call.8} parent=1 // pred_region
      %p316 = scmp.gt.s32.totalorder 1, 0
      // Predicated region
      $region62: #{custom-call.8} parent=60 // pred_check
        %p317 = pneg %p316
      $region63: #{custom-call.8} parent=60 // pred_check_branch
        %319 = sbr.rel (%p317) target = $region65
      $region64: #{custom-call.8} parent=60 // pred_region
        %s320 = sshra.s32 1, 3
        %p321 = scmp.gt.s32.totalorder %s320, 0
        // Predicated region
        $region66: #{custom-call.8} parent=64 // pred_check
          %p322 = pneg %p321
        $region67: #{custom-call.8} parent=64 // pred_check_branch
          %324 = sbr.rel (%p322) target = $region69
        $region68: #{custom-call.8} parent=64 // pred_region
          %s325 = ssub.s32 %s320, 1
          %s326 = smul.u32 %s325, 128
          %s327 = sshra.s32 %s326, 4
          %s328 = scalar_lea.vmem [#allocation6], %s327
          %v329 = vld [vmem:[#allocation6] sm:$0xff]
          // While loop
          $region70: #{custom-call.8} parent=68 // loop_pre_header
            _
          $region71: #{custom-call.8} parent=68 // loop_header
            %s330 = sphi [#allocation6], %s352
            %s331 = sphi %s3, %s353
            %v332 = vphi %v329, %v354
            %s333 = ssub.s32 %s328, 64
            %p334 = scmp.gt.s32.totalorder %s330, %s333
          $region72: #{custom-call.8} parent=68 // loop_header_branch
            %336 = sbr.rel (%p334) target = $region76
          $region73: #{custom-call.8} parent=68 // loop_body
            %337 = vst [vmem:[%s331] sm:$0xff] %v332
            %v338 = vld [vmem:[%s330 + $0x8] sm:$0xff]
            %339 = vst [vmem:[%s331 + $0x8] sm:$0xff] %v338
            %v340 = vld [vmem:[%s330 + $0x10] sm:$0xff]
            %341 = vst [vmem:[%s331 + $0x10] sm:$0xff] %v340
            %v342 = vld [vmem:[%s330 + $0x18] sm:$0xff]
            %343 = vst [vmem:[%s331 + $0x18] sm:$0xff] %v342
            %v344 = vld [vmem:[%s330 + $0x20] sm:$0xff]
            %345 = vst [vmem:[%s331 + $0x20] sm:$0xff] %v344
            %v346 = vld [vmem:[%s330 + $0x28] sm:$0xff]
            %347 = vst [vmem:[%s331 + $0x28] sm:$0xff] %v346
            %v348 = vld [vmem:[%s330 + $0x30] sm:$0xff]
            %349 = vst [vmem:[%s331 + $0x30] sm:$0xff] %v348
            %v350 = vld [vmem:[%s330 + $0x38] sm:$0xff]
            %351 = vst [vmem:[%s331 + $0x38] sm:$0xff] %v350
          $region74: #{custom-call.8} parent=68 // loop_footer
            %s352 = scalar_lea.vmem %s330, 64
            %s353 = scalar_lea.vmem %s331, 64
            %v354 = vld [vmem:[%s330 + $0x40] sm:$0xff]
          $region75: #{custom-call.8} parent=68 // loop_footer_branch
            %355 = sbr.rel target = $region71
          $region76: #{custom-call.8} parent=68 // loop_exit
            _
          // While loop
          $region77: #{custom-call.8} parent=68 // loop_pre_header
            _
          $region78: #{custom-call.8} parent=68 // loop_header
            %s356 = sphi %s330, %s364
            %s357 = sphi %s331, %s365
            %v358 = vphi %v332, %v358
            %p359 = scmp.gt.s32.totalorder %s356, %s328
          $region79: #{custom-call.8} parent=68 // loop_header_branch
            %361 = sbr.rel (%p359) target = $region83
          $region80: #{custom-call.8} parent=68 // loop_body
            %v362 = vld [vmem:[%s356] sm:$0xff]
            %363 = vst [vmem:[%s357] sm:$0xff] %v362
          $region81: #{custom-call.8} parent=68 // loop_footer
            %s364 = scalar_lea.vmem %s356, 8
            %s365 = scalar_lea.vmem %s357, 8
          $region82: #{custom-call.8} parent=68 // loop_footer_branch
            %366 = sbr.rel target = $region78
          $region83: #{custom-call.8} parent=68 // loop_exit
            _
        $region69: #{custom-call.8} parent=64 // pred_fallthru
          _
        %s367 = sand.u32 1, 7
        %s368 = sshllo.u32 0, %s367
        %s369 = smul.u32 %s320, 128
        %s370 = sshra.s32 %s369, 4
        %s371 = scalar_lea.vmem %s3, %s370
        %s372 = smul.u32 %s320, 128
        %s373 = sshra.s32 %s372, 4
        %s374 = scalar_lea.vmem [#allocation6], %s373
        %v375 = vld [vmem:[%s374] sm:%s368]
        %376 = vst [vmem:[%s371] sm:%s368] %v375
      $region65: #{custom-call.8} parent=60 // pred_fallthru
        _
    $region61: #{custom-call.8} parent=1 // pred_fallthru
      _
    // Predicated region
    $region84: #{custom-call.8} parent=1 // pred_check
      _
    $region85: #{custom-call.8} parent=1 // pred_check_branch
      %378 = sbr.rel (0) target = $region87
    $region86: #{custom-call.8} parent=1 // pred_region
      %379 = dma.done [#allocation4], 16
    $region87: #{custom-call.8} parent=1 // pred_fallthru
      _
    // Predicated region
    $region88: #{custom-call.8} parent=1 // pred_check
      _
    $region89: #{custom-call.8} parent=1 // pred_check_branch
      %381 = sbr.rel (0) target = $region91
    $region90: #{custom-call.8} parent=1 // pred_region
      _
    $region91: #{custom-call.8} parent=1 // pred_fallthru
      _
    %382 = vsyncpa [#allocation4], 1

// kernel: custom-call.10
$region0: #{custom-call.10}
  %s0 = inlined_call_operand.vmem [shape: f32[1,8,8], index: 0, kind: input, shape index: {}]
  %s1 = inlined_call_operand.vmem [shape: f32[1,8,8], index: 1, kind: output, shape index: {}]
  $region1: #{custom-call.10} parent=0
    #allocation0 [shape = 'u8[4096]{0}', space=vmem, size = 0x1000, scoped, tag = 'operand span for operand 0']
    #allocation1 [shape = 'u8[4096]{0}', space=vmem, size = 0x1000, scoped, tag = 'operand span for operand 1']
    #allocation2 [shape = 'f32[8,8]{1,0}', space=vmem, size = 0x1000, scoped, tag = 'rescaled input a']
    // Predicated region
    $region2: #{custom-call.10} parent=1 // pred_check
      _
    $region3: #{custom-call.10} parent=1 // pred_check_branch
      %3 = sbr.rel (0) target = $region5
    $region4: #{custom-call.10} parent=1 // pred_region
      // Predicated region
      $region6: #{custom-call.10} parent=4 // pred_check
        _
      $region7: #{custom-call.10} parent=4 // pred_check_branch
        %5 = sbr.rel (0) target = $region9
      $region8: #{custom-call.10} parent=4 // pred_region
        // Predicated region
        $region21: #{custom-call.10} parent=8 // pred_check
          _
        $region22: #{custom-call.10} parent=8 // pred_check_branch
          %20 = sbr.rel (0) target = $region24
        $region23: #{custom-call.10} parent=8 // pred_region
          loop: start=0, step=1, limit=1
          $region25: #{custom-call.10} parent=23 // loop_pre_header
            _
          $region26: #{custom-call.10} parent=23 // loop_header
            %s22 = sphi 0, %s26
            %p23 = scmp.ge.s32.totalorder %s22, 1
            %s27 = sphi %s0, %s0
            %s28 = sphi [#allocation0], [#allocation0]
          $region27: #{custom-call.10} parent=23 // loop_header_branch
            %25 = sbr.rel (%p23) target = $region31
          $region28: #{custom-call.10} parent=23 // loop_body
            %v29 = vld [vmem:[%s27] sm:$0xff]
            %30 = vst [vmem:[%s28] sm:$0xff] %v29
          $region29: #{custom-call.10} parent=23 // loop_footer
            %s26 = sadd.s32 1, %s22
          $region30: #{custom-call.10} parent=23 // loop_footer_branch
            %21 = sbr.rel target = $region26
          $region31: #{custom-call.10} parent=23 // loop_exit
            _
        $region24: #{custom-call.10} parent=8 // pred_fallthru
          _
        // Predicated region
        $region32: #{custom-call.10} parent=8 // pred_check
          _
        $region33: #{custom-call.10} parent=8 // pred_check_branch
          %32 = sbr.rel target = $region35
        $region34: #{custom-call.10} parent=8 // pred_region
          _
        $region35: #{custom-call.10} parent=8 // pred_fallthru
          _
      $region9: #{custom-call.10} parent=4 // pred_fallthru
        _
      // Predicated region
      $region10: #{custom-call.10} parent=4 // pred_check
        _
      $region11: #{custom-call.10} parent=4 // pred_check_branch
        %7 = sbr.rel target = $region13
      $region12: #{custom-call.10} parent=4 // pred_region
        loop: start=0, step=1, limit=1
        $region14: #{custom-call.10} parent=12 // loop_pre_header
          _
        $region15: #{custom-call.10} parent=12 // loop_header
          %s10 = sphi 0, %s14
          %p11 = scmp.ge.s32.totalorder %s10, 1
          %s15 = sphi %s0, %s0
          %s16 = sphi [#allocation0], [#allocation0]
        $region16: #{custom-call.10} parent=12 // loop_header_branch
          %13 = sbr.rel (%p11) target = $region20
        $region17: #{custom-call.10} parent=12 // loop_body
          %v17 = vld [vmem:[%s15] sm:$0xff]
          %18 = vst [vmem:[%s16] sm:$0xff] %v17
        $region18: #{custom-call.10} parent=12 // loop_footer
          %s14 = sadd.s32 1, %s10
        $region19: #{custom-call.10} parent=12 // loop_footer_branch
          %9 = sbr.rel target = $region15
        $region20: #{custom-call.10} parent=12 // loop_exit
          _
      $region13: #{custom-call.10} parent=4 // pred_fallthru
        _
    $region5: #{custom-call.10} parent=1 // pred_fallthru
      _
    %33 = vnop
    %v34 = vlaneseq
    %v35 = vand.u32 %v34, 127
    %vm36 = vcmp.lt.s32.totalorder %v35, 8
    %v37 = vlaneseq
    %v38 = vshrl.u32 %v37, 7
    %vm40 = vcmp.eq.s32.totalorder %v38, %v35
    %v41 = vld [vmem:[#allocation0] sm:$0xff]
    %v42 = vsel %vm40, %v41, 0.0
    %43 = vadd.xlane.f32.xlu0 %v42
    %v44 = vpop.xlane.xlu0 %43
    %vm45 = vcmp.ge.s32.totalorder %v38, %v35
    %vm46 = vmand %vm45, %vm36
    %v47 = vsel %vm46, %v41, 0.0
    %v48 = vrcp.pop %v44
    %v49 = vmul.f32 %v47, %v48
    %50 = vst [vmem:[#allocation2] sm:$0xff] %v49
    %v51 = vlaneseq
    %v52 = vand.u32 %v51, 127
    %v53 = vlaneseq
    %v54 = vshrl.u32 %v53, 7
    %vm56 = vcmp.eq.s32.totalorder %v52, %v54
    %v57 = vlaneseq
    %v58 = vand.u32 %v57, 127
    %vm59 = vcmp.eq.s32.totalorder %v58, 0
    %v60 = vsel %vm59, 1.0, -1.0
    %v61 = vsel %vm56, %v60, 0.0
    %s62 = scalar_lea.vmem [#allocation2], 1
    %v63 = vld [vmem:[%s62] ss:$0 sm:$0xff]
    %v64 = vxor.u32 %v63, 2147483648
    %v65 = vlaneseq
    %v66 = vand.u32 %v65, 127
    %vm67 = vcmp.eq.s32.totalorder %v66, 1
    %v68 = vmul.f32 %v64, %v61
    %69 = vadd.xlane.f32.xlu0 %v68
    %v70 = vpop.xlane.xlu0 %69
    %v71 = vsel %vm67, %v70, %v61
    %s72 = scalar_lea.vmem [#allocation2], 2
    %v73 = vld [vmem:[%s72] ss:$0 sm:$0xff]
    %v74 = vxor.u32 %v73, 2147483648
    %v75 = vlaneseq
    %v76 = vand.u32 %v75, 127
    %vm77 = vcmp.eq.s32.totalorder %v76, 2
    %v78 = vmul.f32 %v74, %v71
    %79 = vadd.xlane.f32.xlu0 %v78
    %v80 = vpop.xlane.xlu0 %79
    %v81 = vsel %vm77, %v80, %v71
    %s82 = scalar_lea.vmem [#allocation2], 3
    %v83 = vld [vmem:[%s82] ss:$0 sm:$0xff]
    %v84 = vxor.u32 %v83, 2147483648
    %v85 = vlaneseq
    %v86 = vand.u32 %v85, 127
    %vm87 = vcmp.eq.s32.totalorder %v86, 3
    %v88 = vmul.f32 %v84, %v81
    %89 = vadd.xlane.f32.xlu0 %v88
    %v90 = vpop.xlane.xlu0 %89
    %v91 = vsel %vm87, %v90, %v81
    %s92 = scalar_lea.vmem [#allocation2], 4
    %v93 = vld [vmem:[%s92] ss:$0 sm:$0xff]
    %v94 = vxor.u32 %v93, 2147483648
    %v95 = vlaneseq
    %v96 = vand.u32 %v95, 127
    %vm97 = vcmp.eq.s32.totalorder %v96, 4
    %v98 = vmul.f32 %v94, %v91
    %99 = vadd.xlane.f32.xlu0 %v98
    %v100 = vpop.xlane.xlu0 %99
    %v101 = vsel %vm97, %v100, %v91
    %s102 = scalar_lea.vmem [#allocation2], 5
    %v103 = vld [vmem:[%s102] ss:$0 sm:$0xff]
    %v104 = vxor.u32 %v103, 2147483648
    %v105 = vlaneseq
    %v106 = vand.u32 %v105, 127
    %vm107 = vcmp.eq.s32.totalorder %v106, 5
    %v108 = vmul.f32 %v104, %v101
    %109 = vadd.xlane.f32.xlu0 %v108
    %v110 = vpop.xlane.xlu0 %109
    %v111 = vsel %vm107, %v110, %v101
    %s112 = scalar_lea.vmem [#allocation2], 6
    %v113 = vld [vmem:[%s112] ss:$0 sm:$0xff]
    %v114 = vxor.u32 %v113, 2147483648
    %v115 = vlaneseq
    %v116 = vand.u32 %v115, 127
    %vm117 = vcmp.eq.s32.totalorder %v116, 6
    %v118 = vmul.f32 %v114, %v111
    %119 = vadd.xlane.f32.xlu0 %v118
    %v120 = vpop.xlane.xlu0 %119
    %v121 = vsel %vm117, %v120, %v111
    %s122 = scalar_lea.vmem [#allocation2], 7
    %v123 = vld [vmem:[%s122] ss:$0 sm:$0xff]
    %v124 = vxor.u32 %v123, 2147483648
    %v125 = vlaneseq
    %v126 = vand.u32 %v125, 127
    %vm127 = vcmp.eq.s32.totalorder %v126, 7
    %v128 = vmul.f32 %v124, %v121
    %129 = vadd.xlane.f32.xlu0 %v128
    %v130 = vpop.xlane.xlu0 %129
    %v131 = vsel %vm127, %v130, %v121
    %v132 = vrcp.pop %v44
    %v133 = vmul.f32 %v131, %v132
    %vm134 = vweird.f32 %v44
    %v135 = vsel %vm134, %v131, %v133
    %136 = vst [vmem:[#allocation1] sm:$0xff] %v135
    // Predicated region
    $region36: #{custom-call.10} parent=1 // pred_check
      _
    $region37: #{custom-call.10} parent=1 // pred_check_branch
      %138 = sbr.rel (0) target = $region39
    $region38: #{custom-call.10} parent=1 // pred_region
      // Predicated region
      $region40: #{custom-call.10} parent=38 // pred_check
        _
      $region41: #{custom-call.10} parent=38 // pred_check_branch
        %140 = sbr.rel (0) target = $region43
      $region42: #{custom-call.10} parent=38 // pred_region
        // Predicated region
        $region55: #{custom-call.10} parent=42 // pred_check
          _
        $region56: #{custom-call.10} parent=42 // pred_check_branch
          %155 = sbr.rel (0) target = $region58
        $region57: #{custom-call.10} parent=42 // pred_region
          loop: start=0, step=1, limit=1
          $region59: #{custom-call.10} parent=57 // loop_pre_header
            _
          $region60: #{custom-call.10} parent=57 // loop_header
            %s157 = sphi 0, %s161
            %p158 = scmp.ge.s32.totalorder %s157, 1
            %s162 = sphi [#allocation1], [#allocation1]
            %s163 = sphi %s1, %s1
          $region61: #{custom-call.10} parent=57 // loop_header_branch
            %160 = sbr.rel (%p158) target = $region65
          $region62: #{custom-call.10} parent=57 // loop_body
            %v164 = vld [vmem:[%s162] sm:$0xff]
            %165 = vst [vmem:[%s163] sm:$0xff] %v164
          $region63: #{custom-call.10} parent=57 // loop_footer
            %s161 = sadd.s32 1, %s157
          $region64: #{custom-call.10} parent=57 // loop_footer_branch
            %156 = sbr.rel target = $region60
          $region65: #{custom-call.10} parent=57 // loop_exit
            _
        $region58: #{custom-call.10} parent=42 // pred_fallthru
          _
        // Predicated region
        $region66: #{custom-call.10} parent=42 // pred_check
          _
        $region67: #{custom-call.10} parent=42 // pred_check_branch
          %167 = sbr.rel target = $region69
        $region68: #{custom-call.10} parent=42 // pred_region
          _
        $region69: #{custom-call.10} parent=42 // pred_fallthru
          _
      $region43: #{custom-call.10} parent=38 // pred_fallthru
        _
      // Predicated region
      $region44: #{custom-call.10} parent=38 // pred_check
        _
      $region45: #{custom-call.10} parent=38 // pred_check_branch
        %142 = sbr.rel target = $region47
      $region46: #{custom-call.10} parent=38 // pred_region
        loop: start=0, step=1, limit=1
        $region48: #{custom-call.10} parent=46 // loop_pre_header
          _
        $region49: #{custom-call.10} parent=46 // loop_header
          %s145 = sphi 0, %s149
          %p146 = scmp.ge.s32.totalorder %s145, 1
          %s150 = sphi [#allocation1], [#allocation1]
          %s151 = sphi %s1, %s1
        $region50: #{custom-call.10} parent=46 // loop_header_branch
          %148 = sbr.rel (%p146) target = $region54
        $region51: #{custom-call.10} parent=46 // loop_body
          %v152 = vld [vmem:[%s150] sm:$0xff]
          %153 = vst [vmem:[%s151] sm:$0xff] %v152
        $region52: #{custom-call.10} parent=46 // loop_footer
          %s149 = sadd.s32 1, %s145
        $region53: #{custom-call.10} parent=46 // loop_footer_branch
          %144 = sbr.rel target = $region49
        $region54: #{custom-call.10} parent=46 // loop_exit
          _
      $region47: #{custom-call.10} parent=38 // pred_fallthru
        _
    $region39: #{custom-call.10} parent=1 // pred_fallthru
      _
    %168 = vnop

// kernel: custom-call.9
$region0: #{custom-call.9}
  %s0 = inlined_call_operand.vmem [shape: f32[1,8,8], index: 0, kind: input, shape index: {}]
  %s1 = inlined_call_operand.vmem [shape: f32[1,8,8], index: 1, kind: output, shape index: {}]
  $region1: #{custom-call.9} parent=0
    #allocation0 [shape = 'u8[4096]{0}', space=vmem, size = 0x1000, scoped, tag = 'operand span for operand 0']
    #allocation1 [shape = 'u8[4096]{0}', space=vmem, size = 0x1000, scoped, tag = 'operand span for operand 1']
    #allocation2 [shape = 'f32[8,8]{1,0}', space=vmem, size = 0x1000, scoped, tag = 'rescaled input a']
    // Predicated region
    $region2: #{custom-call.9} parent=1 // pred_check
      _
    $region3: #{custom-call.9} parent=1 // pred_check_branch
      %3 = sbr.rel (0) target = $region5
    $region4: #{custom-call.9} parent=1 // pred_region
      // Predicated region
      $region6: #{custom-call.9} parent=4 // pred_check
        _
      $region7: #{custom-call.9} parent=4 // pred_check_branch
        %5 = sbr.rel (0) target = $region9
      $region8: #{custom-call.9} parent=4 // pred_region
        // Predicated region
        $region21: #{custom-call.9} parent=8 // pred_check
          _
        $region22: #{custom-call.9} parent=8 // pred_check_branch
          %20 = sbr.rel (0) target = $region24
        $region23: #{custom-call.9} parent=8 // pred_region
          loop: start=0, step=1, limit=1
          $region25: #{custom-call.9} parent=23 // loop_pre_header
            _
          $region26: #{custom-call.9} parent=23 // loop_header
            %s22 = sphi 0, %s26
            %p23 = scmp.ge.s32.totalorder %s22, 1
            %s27 = sphi %s0, %s0
            %s28 = sphi [#allocation0], [#allocation0]
          $region27: #{custom-call.9} parent=23 // loop_header_branch
            %25 = sbr.rel (%p23) target = $region31
          $region28: #{custom-call.9} parent=23 // loop_body
            %v29 = vld [vmem:[%s27] sm:$0xff]
            %30 = vst [vmem:[%s28] sm:$0xff] %v29
          $region29: #{custom-call.9} parent=23 // loop_footer
            %s26 = sadd.s32 1, %s22
          $region30: #{custom-call.9} parent=23 // loop_footer_branch
            %21 = sbr.rel target = $region26
          $region31: #{custom-call.9} parent=23 // loop_exit
            _
        $region24: #{custom-call.9} parent=8 // pred_fallthru
          _
        // Predicated region
        $region32: #{custom-call.9} parent=8 // pred_check
          _
        $region33: #{custom-call.9} parent=8 // pred_check_branch
          %32 = sbr.rel target = $region35
        $region34: #{custom-call.9} parent=8 // pred_region
          _
        $region35: #{custom-call.9} parent=8 // pred_fallthru
          _
      $region9: #{custom-call.9} parent=4 // pred_fallthru
        _
      // Predicated region
      $region10: #{custom-call.9} parent=4 // pred_check
        _
      $region11: #{custom-call.9} parent=4 // pred_check_branch
        %7 = sbr.rel target = $region13
      $region12: #{custom-call.9} parent=4 // pred_region
        loop: start=0, step=1, limit=1
        $region14: #{custom-call.9} parent=12 // loop_pre_header
          _
        $region15: #{custom-call.9} parent=12 // loop_header
          %s10 = sphi 0, %s14
          %p11 = scmp.ge.s32.totalorder %s10, 1
          %s15 = sphi %s0, %s0
          %s16 = sphi [#allocation0], [#allocation0]
        $region16: #{custom-call.9} parent=12 // loop_header_branch
          %13 = sbr.rel (%p11) target = $region20
        $region17: #{custom-call.9} parent=12 // loop_body
          %v17 = vld [vmem:[%s15] sm:$0xff]
          %18 = vst [vmem:[%s16] sm:$0xff] %v17
        $region18: #{custom-call.9} parent=12 // loop_footer
          %s14 = sadd.s32 1, %s10
        $region19: #{custom-call.9} parent=12 // loop_footer_branch
          %9 = sbr.rel target = $region15
        $region20: #{custom-call.9} parent=12 // loop_exit
          _
      $region13: #{custom-call.9} parent=4 // pred_fallthru
        _
    $region5: #{custom-call.9} parent=1 // pred_fallthru
      _
    %33 = vnop
    %v34 = vlaneseq
    %v35 = vand.u32 %v34, 127
    %vm36 = vcmp.lt.s32.totalorder %v35, 8
    %v37 = vlaneseq
    %v38 = vshrl.u32 %v37, 7
    %vm40 = vcmp.eq.s32.totalorder %v38, %v35
    %v41 = vld [vmem:[#allocation0] sm:$0xff]
    %v42 = vsel %vm40, %v41, 0.0
    %43 = vadd.xlane.f32.xlu0 %v42
    %v44 = vpop.xlane.xlu0 %43
    %vm45 = vcmp.le.s32.totalorder %v38, %v35
    %vm46 = vmand %vm45, %vm36
    %v47 = vsel %vm46, %v41, 0.0
    %v48 = vrcp.pop %v44
    %v49 = vmul.f32 %v47, %v48
    %50 = vst [vmem:[#allocation2] sm:$0xff] %v49
    %v51 = vlaneseq
    %v52 = vand.u32 %v51, 127
    %v53 = vlaneseq
    %v54 = vshrl.u32 %v53, 7
    %vm56 = vcmp.eq.s32.totalorder %v52, %v54
    %v57 = vlaneseq
    %v58 = vand.u32 %v57, 127
    %vm59 = vcmp.eq.s32.totalorder %v58, 7
    %v60 = vsel %vm59, 1.0, -1.0
    %v61 = vsel %vm56, %v60, 0.0
    %s62 = scalar_lea.vmem [#allocation2], 6
    %v63 = vld [vmem:[%s62] ss:$0 sm:$0xff]
    %v64 = vxor.u32 %v63, 2147483648
    %v65 = vlaneseq
    %v66 = vand.u32 %v65, 127
    %vm67 = vcmp.eq.s32.totalorder %v66, 6
    %v68 = vmul.f32 %v64, %v61
    %69 = vadd.xlane.f32.xlu0 %v68
    %v70 = vpop.xlane.xlu0 %69
    %v71 = vsel %vm67, %v70, %v61
    %s72 = scalar_lea.vmem [#allocation2], 5
    %v73 = vld [vmem:[%s72] ss:$0 sm:$0xff]
    %v74 = vxor.u32 %v73, 2147483648
    %v75 = vlaneseq
    %v76 = vand.u32 %v75, 127
    %vm77 = vcmp.eq.s32.totalorder %v76, 5
    %v78 = vmul.f32 %v74, %v71
    %79 = vadd.xlane.f32.xlu0 %v78
    %v80 = vpop.xlane.xlu0 %79
    %v81 = vsel %vm77, %v80, %v71
    %s82 = scalar_lea.vmem [#allocation2], 4
    %v83 = vld [vmem:[%s82] ss:$0 sm:$0xff]
    %v84 = vxor.u32 %v83, 2147483648
    %v85 = vlaneseq
    %v86 = vand.u32 %v85, 127
    %vm87 = vcmp.eq.s32.totalorder %v86, 4
    %v88 = vmul.f32 %v84, %v81
    %89 = vadd.xlane.f32.xlu0 %v88
    %v90 = vpop.xlane.xlu0 %89
    %v91 = vsel %vm87, %v90, %v81
    %s92 = scalar_lea.vmem [#allocation2], 3
    %v93 = vld [vmem:[%s92] ss:$0 sm:$0xff]
    %v94 = vxor.u32 %v93, 2147483648
    %v95 = vlaneseq
    %v96 = vand.u32 %v95, 127
    %vm97 = vcmp.eq.s32.totalorder %v96, 3
    %v98 = vmul.f32 %v94, %v91
    %99 = vadd.xlane.f32.xlu0 %v98
    %v100 = vpop.xlane.xlu0 %99
    %v101 = vsel %vm97, %v100, %v91
    %s102 = scalar_lea.vmem [#allocation2], 2
    %v103 = vld [vmem:[%s102] ss:$0 sm:$0xff]
    %v104 = vxor.u32 %v103, 2147483648
    %v105 = vlaneseq
    %v106 = vand.u32 %v105, 127
    %vm107 = vcmp.eq.s32.totalorder %v106, 2
    %v108 = vmul.f32 %v104, %v101
    %109 = vadd.xlane.f32.xlu0 %v108
    %v110 = vpop.xlane.xlu0 %109
    %v111 = vsel %vm107, %v110, %v101
    %s112 = scalar_lea.vmem [#allocation2], 1
    %v113 = vld [vmem:[%s112] ss:$0 sm:$0xff]
    %v114 = vxor.u32 %v113, 2147483648
    %v115 = vlaneseq
    %v116 = vand.u32 %v115, 127
    %vm117 = vcmp.eq.s32.totalorder %v116, 1
    %v118 = vmul.f32 %v114, %v111
    %119 = vadd.xlane.f32.xlu0 %v118
    %v120 = vpop.xlane.xlu0 %119
    %v121 = vsel %vm117, %v120, %v111
    %v122 = vld [vmem:[#allocation2] ss:$0 sm:$0xff]
    %v123 = vxor.u32 %v122, 2147483648
    %v124 = vlaneseq
    %v125 = vand.u32 %v124, 127
    %vm126 = vcmp.eq.s32.totalorder %v125, 0
    %v127 = vmul.f32 %v123, %v121
    %128 = vadd.xlane.f32.xlu0 %v127
    %v129 = vpop.xlane.xlu0 %128
    %v130 = vsel %vm126, %v129, %v121
    %v131 = vrcp.pop %v44
    %v132 = vmul.f32 %v130, %v131
    %vm133 = vweird.f32 %v44
    %v134 = vsel %vm133, %v130, %v132
    %135 = vst [vmem:[#allocation1] sm:$0xff] %v134
    // Predicated region
    $region36: #{custom-call.9} parent=1 // pred_check
      _
    $region37: #{custom-call.9} parent=1 // pred_check_branch
      %137 = sbr.rel (0) target = $region39
    $region38: #{custom-call.9} parent=1 // pred_region
      // Predicated region
      $region40: #{custom-call.9} parent=38 // pred_check
        _
      $region41: #{custom-call.9} parent=38 // pred_check_branch
        %139 = sbr.rel (0) target = $region43
      $region42: #{custom-call.9} parent=38 // pred_region
        // Predicated region
        $region55: #{custom-call.9} parent=42 // pred_check
          _
        $region56: #{custom-call.9} parent=42 // pred_check_branch
          %154 = sbr.rel (0) target = $region58
        $region57: #{custom-call.9} parent=42 // pred_region
          loop: start=0, step=1, limit=1
          $region59: #{custom-call.9} parent=57 // loop_pre_header
            _
          $region60: #{custom-call.9} parent=57 // loop_header
            %s156 = sphi 0, %s160
            %p157 = scmp.ge.s32.totalorder %s156, 1
            %s161 = sphi [#allocation1], [#allocation1]
            %s162 = sphi %s1, %s1
          $region61: #{custom-call.9} parent=57 // loop_header_branch
            %159 = sbr.rel (%p157) target = $region65
          $region62: #{custom-call.9} parent=57 // loop_body
            %v163 = vld [vmem:[%s161] sm:$0xff]
            %164 = vst [vmem:[%s162] sm:$0xff] %v163
          $region63: #{custom-call.9} parent=57 // loop_footer
            %s160 = sadd.s32 1, %s156
          $region64: #{custom-call.9} parent=57 // loop_footer_branch
            %155 = sbr.rel target = $region60
          $region65: #{custom-call.9} parent=57 // loop_exit
            _
        $region58: #{custom-call.9} parent=42 // pred_fallthru
          _
        // Predicated region
        $region66: #{custom-call.9} parent=42 // pred_check
          _
        $region67: #{custom-call.9} parent=42 // pred_check_branch
          %166 = sbr.rel target = $region69
        $region68: #{custom-call.9} parent=42 // pred_region
          _
        $region69: #{custom-call.9} parent=42 // pred_fallthru
          _
      $region43: #{custom-call.9} parent=38 // pred_fallthru
        _
      // Predicated region
      $region44: #{custom-call.9} parent=38 // pred_check
        _
      $region45: #{custom-call.9} parent=38 // pred_check_branch
        %141 = sbr.rel target = $region47
      $region46: #{custom-call.9} parent=38 // pred_region
        loop: start=0, step=1, limit=1
        $region48: #{custom-call.9} parent=46 // loop_pre_header
          _
        $region49: #{custom-call.9} parent=46 // loop_header
          %s144 = sphi 0, %s148
          %p145 = scmp.ge.s32.totalorder %s144, 1
          %s149 = sphi [#allocation1], [#allocation1]
          %s150 = sphi %s1, %s1
        $region50: #{custom-call.9} parent=46 // loop_header_branch
          %147 = sbr.rel (%p145) target = $region54
        $region51: #{custom-call.9} parent=46 // loop_body
          %v151 = vld [vmem:[%s149] sm:$0xff]
          %152 = vst [vmem:[%s150] sm:$0xff] %v151
        $region52: #{custom-call.9} parent=46 // loop_footer
          %s148 = sadd.s32 1, %s144
        $region53: #{custom-call.9} parent=46 // loop_footer_branch
          %143 = sbr.rel target = $region49
        $region54: #{custom-call.9} parent=46 // loop_exit
          _
      $region47: #{custom-call.9} parent=38 // pred_fallthru
        _
    $region39: #{custom-call.9} parent=1 // pred_fallthru
      _
    %167 = vnop

// kernel: _forward.1
$region0: #{_forward.1}
  #allocation0 [shape = 'u32[]', space=smem, size = 0x4, offset = 0x4, fixed_abs, tag = 'smem constant byte address 0x4 - core index']
  #allocation1 [shape = 'u32[144,128]{1,0:T(1,128)}', space=vmem, size = 0x12000, scoped, tag = 'internal scratch']
  %s0 = inlined_call_operand.vmem [shape: f32[8], index: 0, kind: input, shape index: {}]
  %s1 = inlined_call_operand.vmem [shape: bf16[160,16], index: 1, kind: input, shape index: {}]
  %s2 = inlined_call_operand.vmem [shape: f32[10,256], index: 2, kind: output, shape index: {}]
  %s3 = sld [smem:[#allocation0]]
  $region79: #{_forward.1} parent=0
    _
  %s5 = ssub.s32 1, %s3
  %s6 = scalar_select 0, %s5, %s3
  $region1: #{_forward.1} parent=0
    #allocation2 [shape = 'u8[512]{0}', space=smem, size = 0x200, scoped, tag = 'input window, operand 0, single buffered']
    #allocation3 [shape = 's32[2]{0}', space=sflag, size = 0x8, scoped, tag = 'scoped memory for _forward.1']
    #allocation4 [shape = 'u8[16384]{0}', space=vmem, size = 0x4000, scoped, tag = 'output window, operand 0']
    %7 = vsyncpa [#allocation3], 0
    loop: start=0, step=1, limit=4
    $region2: #{_forward.1} parent=1 // loop_pre_header
      _
    $region3: #{_forward.1} parent=1 // loop_header
      %s9 = sphi 0, %s13
      %p10 = scmp.ge.s32.totalorder %s9, 4
      %s17 = sphi 0, %s17
      %s19 = sphi 0, %s17
      %s20 = sphi 0, %s19
      %s34 = sphi 0, %s20
      %s38 = sphi 0, %s38
      %s40 = sphi 0, %s38
      %s41 = sphi 0, %s40
      %s55 = sphi 0, %s41
      %s61 = sphi 0, %s63
      %s64 = sphi 0, %s61
      %s65 = sphi 0, %s64
      %s81 = sphi 0, %s65
    $region4: #{_forward.1} parent=1 // loop_header_branch
      %12 = sbr.rel (%p10) target = $region8
    $region5: #{_forward.1} parent=1 // loop_body
      %s14 = ssub.s32 %s9, 1
      %s15 = ssub.s32 %s9, 2
      %s16 = sadd.s32 %s9, 1
      %s18 = sadd.s32 %s17, 1
      %p21 = scmp.eq.s32.totalorder %s9, 1
      %p22 = scmp.ne.s32.totalorder %s17, %s19
      %p23 = scmp.eq.s32.totalorder %s9, 0
      %p24 = por %p22, %p23
      %p25 = scmp.ne.s32.totalorder %s17, %s19
      %p26 = scmp.eq.s32.totalorder %s14, 1
      %p27 = por %p25, %p26
      %p28 = scmp.ne.s32.totalorder %s19, %s20
      %p29 = scmp.eq.s32.totalorder %s14, 0
      %p30 = por %p28, %p29
      %p31 = scmp.ne.s32.totalorder %s19, %s20
      %p32 = scmp.eq.s32.totalorder %s15, 1
      %p33 = por %p31, %p32
      %p35 = scmp.ne.s32.totalorder %s20, %s34
      %p36 = scmp.eq.s32.totalorder %s15, 0
      %p37 = por %p35, %p36
      %s39 = sadd.s32 %s38, 1
      %p42 = scmp.eq.s32.totalorder %s9, 1
      %p43 = scmp.ne.s32.totalorder %s38, %s40
      %p44 = scmp.eq.s32.totalorder %s9, 0
      %p45 = por %p43, %p44
      %p46 = scmp.ne.s32.totalorder %s38, %s40
      %p47 = scmp.eq.s32.totalorder %s14, 1
      %p48 = por %p46, %p47
      %p49 = scmp.ne.s32.totalorder %s40, %s41
      %p50 = scmp.eq.s32.totalorder %s14, 0
      %p51 = por %p49, %p50
      %p52 = scmp.ne.s32.totalorder %s40, %s41
      %p53 = scmp.eq.s32.totalorder %s15, 1
      %p54 = por %p52, %p53
      %p56 = scmp.ne.s32.totalorder %s41, %s55
      %p57 = scmp.eq.s32.totalorder %s15, 0
      %p58 = por %p56, %p57
      %s59 = ssub.s32 %s9, %s16
      %p60 = scmp.eq.s32.totalorder %s59, 0
      %s62 = sadd.s32 %s61, 1
      %s63 = scalar_select %p60, %s61, %s62
      %p66 = pneg %p60
      %p67 = scmp.eq.s32.totalorder %s9, 1
      %p68 = por %p66, %p67
      %p69 = scmp.ne.s32.totalorder %s61, %s64
      %p70 = scmp.eq.s32.totalorder %s9, 0
      %p71 = por %p69, %p70
      %p72 = scmp.ne.s32.totalorder %s61, %s64
      %p73 = scmp.eq.s32.totalorder %s14, 1
      %p74 = por %p72, %p73
      %p75 = scmp.ne.s32.totalorder %s64, %s65
      %p76 = scmp.eq.s32.totalorder %s14, 0
      %p77 = por %p75, %p76
      %p78 = scmp.ne.s32.totalorder %s64, %s65
      %p79 = scmp.eq.s32.totalorder %s15, 1
      %p80 = por %p78, %p79
      %p82 = scmp.ne.s32.totalorder %s65, %s81
      %p83 = scmp.eq.s32.totalorder %s15, 0
      %p84 = por %p82, %p83
      %p85 = scmp.le.s32.totalorder 1, %s9
      %p86 = scmp.lt.s32.totalorder %s9, 3
      %p87 = pnand %p85, %p86
      %p88 = pneg %p87
      // Predicated region
      $region9: #{_forward.1} parent=5 // pred_check
        _
      $region10: #{_forward.1} parent=5 // pred_check_branch
        %90 = sbr.rel (%p87) target = $region12
      $region11: #{_forward.1} parent=5 // pred_region
        %s91 = ssub.s32 %s9, 1
        // Predicated region
        $region13: #{_forward.1} parent=11 // pred_check
          %p92 = pneg %p30
        $region14: #{_forward.1} parent=11 // pred_check_branch
          %94 = sbr.rel (%p92) target = $region16
        $region15: #{_forward.1} parent=11 // pred_region
          %s96 = ssub.s32 16, 16
          %97 = vsyncadd [#allocation3], %s96
          %s99 = sshll.u32 %s0, 4
          %s100 = int_to_ptr.vmem [resolvable:$true] %s99
          %102 = dma.vmem_to_smem %s100, 16, [#allocation2], [#allocation3]
        $region16: #{_forward.1} parent=11 // pred_fallthru
          _
        // Predicated region
        $region17: #{_forward.1} parent=11 // pred_check
          %p103 = pneg %p51
        $region18: #{_forward.1} parent=11 // pred_check_branch
          %105 = sbr.rel (%p103) target = $region20
        $region19: #{_forward.1} parent=11 // pred_region
          _
        $region20: #{_forward.1} parent=11 // pred_fallthru
          _
      $region12: #{_forward.1} parent=5 // pred_fallthru
        _
      %p106 = scmp.lt.s32.totalorder %s9, 2
      // Predicated region
      $region21: #{_forward.1} parent=5 // pred_check
        %p107 = pneg %p106
      $region22: #{_forward.1} parent=5 // pred_check_branch
        %109 = sbr.rel (%p107) target = $region24
      $region23: #{_forward.1} parent=5 // pred_region
        _
      $region24: #{_forward.1} parent=5 // pred_fallthru
        _
      %p110 = scmp.le.s32.totalorder 1, %s9
      %p111 = scmp.lt.s32.totalorder %s9, 3
      %p112 = pnand %p110, %p111
      %p113 = pneg %p112
      // Predicated region
      $region25: #{_forward.1} parent=5 // pred_check
        _
      $region26: #{_forward.1} parent=5 // pred_check_branch
        %115 = sbr.rel (%p112) target = $region28
      $region27: #{_forward.1} parent=5 // pred_region
        %s116 = ssub.s32 %s9, 1
        // Predicated region
        $region29: #{_forward.1} parent=27 // pred_check
          %p117 = pneg %p30
        $region30: #{_forward.1} parent=27 // pred_check_branch
          %119 = sbr.rel (%p117) target = $region32
        $region31: #{_forward.1} parent=27 // pred_region
          %120 = dma.done [#allocation3], 16
        $region32: #{_forward.1} parent=27 // pred_fallthru
          _
        %121 = sfence
        %p122 = pneg %p30
        %p123 = pneg %p27
        %p124 = pneg %p51
        %p125 = pneg %p48
        %p126 = pneg %p77
        %p127 = pneg %p74
        %s128 = sand.u32 %s64, 1
        %s129 = sand.u32 %s64, 1
        %s130 = smul.addr %s129, 16
        %s131 = scalar_lea.vmem [#allocation4], %s130
        %s133 = sld [smem:[#allocation2]]
        %s134 = sld [smem:[#allocation2 + $0x1]]
        %s135 = sld [smem:[#allocation2 + $0x2]]
        %s136 = sld [smem:[#allocation2 + $0x3]]
        %s137 = sld [smem:[#allocation2 + $0x4]]
        %s138 = sld [smem:[#allocation2 + $0x5]]
        %s139 = sld [smem:[#allocation2 + $0x6]]
        %s140 = sld [smem:[#allocation2 + $0x7]]
        %s141 = smul.u32 %s14, 128
        %v142 = vlaneseq
        %v143 = vand.u32 %v142, 127
        %v144 = vstv %s141
        %v145 = vadd.s32 %v144, %v143
        %vm146 = vcmp.lt.s32.totalorder %v145, 255
        %v147 = vsel %vm146, %v145, 255
        %v148 = vshra.s32 %v147, 4
        %v149 = vand.u32 %v147, 15
        %v150 = vcvt.s32.f32 %v148
        %v151 = vcvt.s32.f32 %v149
        %v152 = vadd.f32 %v151, 0.5
        %v153 = vadd.f32 %v150, 0.5
        %v154 = vstv %s139
        %v155 = vmul.f32 %v154, %v152
        %v156 = vstv %s140
        %v157 = vmul.f32 %v156, %v153
        %v158 = vadd.f32 %v155, %v157
        %v159 = vadd.f32 %v158, 1.0
        %v160 = vrcp.pop %v159
        %v161 = vmul.f32 %v159, %v160
        %v162 = vsub.f32 2.0, %v161
        %v163 = vmul.f32 %v160, %v162
        %v164 = vstv %s133
        %v165 = vmul.f32 %v164, %v152
        %v166 = vstv %s134
        %v167 = vmul.f32 %v166, %v153
        %v168 = vadd.f32 %v165, %v167
        %v169 = vstv %s135
        %v170 = vadd.f32 %v168, %v169
        %v171 = vmul.f32 %v170, %v163
        %v172 = vmul.f32 %v171, 0.125
        %v173 = vsub.f32 %v172, 1.0
        %v174 = vstv %s136
        %v175 = vmul.f32 %v174, %v152
        %v176 = vstv %s137
        %v177 = vmul.f32 %v176, %v153
        %v178 = vadd.f32 %v175, %v177
        %v179 = vstv %s138
        %v180 = vadd.f32 %v178, %v179
        %v181 = vmul.f32 %v180, %v163
        %v182 = vmul.f32 %v181, 0.125
        %v183 = vsub.f32 %v182, 1.0
        %v184 = vadd.f32 %v173, 1.0
        %v185 = vmul.f32 %v184, 16.0
        %v186 = vsub.f32 %v185, 1.0
        %v187 = vmul.f32 %v186, 0.5
        %v188 = vadd.f32 %v183, 1.0
        %v189 = vmul.f32 %v188, 16.0
        %v190 = vsub.f32 %v189, 1.0
        %v191 = vmul.f32 %v190, 0.5
        %v192 = vlaneseq
        %v193 = vshrl.u32 %v192, 7
        %v194 = vadd.s32 %v193, 8
        %v195 = vcvt.s32.f32 %v193
        %v196 = vcvt.s32.f32 %v194
        %v197 = vsub.f32 %v187, %v195
        %v198 = vsub.f32 %v187, %v196
        %v199 = vand.u32 2147483647, %v197
        %v200 = vand.u32 2147483647, %v198
        %v201 = vsub.f32 1.0, %v199
        %v202 = vsub.f32 1.0, %v200
        %v203 = vmax.f32 %v201, 0.0
        %v204 = vmax.f32 %v202, 0.0
        %v205 = vsub.f32 %v191, %v195
        %v206 = vsub.f32 %v191, %v196
        %v207 = vand.u32 2147483647, %v205
        %v208 = vand.u32 2147483647, %v206
        %v209 = vsub.f32 1.0, %v207
        %v210 = vsub.f32 1.0, %v208
        %v211 = vmax.f32 %v209, 0.0
        %v212 = vmax.f32 %v210, 0.0
        %v213 = vld [vmem:[%s1] sm:$0xf]
        %v214 = vld [vmem:[%s1 + $0x4] sm:$0xf]
        %v215 = vld [vmem:[%s1 + $0x8] sm:$0xf]
        %v216 = vld [vmem:[%s1 + $0xc] sm:$0xf]
        %v217 = vld [vmem:[%s1 + $0x10] sm:$0xf]
        %v218 = vld [vmem:[%s1 + $0x14] sm:$0xf]
        %v219 = vld [vmem:[%s1 + $0x18] sm:$0xf]
        %v220 = vld [vmem:[%s1 + $0x1c] sm:$0xf]
        %v221 = vld [vmem:[%s1 + $0x20] sm:$0xf]
        %v222 = vld [vmem:[%s1 + $0x24] sm:$0xf]
        %v223 = vld [vmem:[%s1 + $0x28] sm:$0xf]
        %v224 = vld [vmem:[%s1 + $0x2c] sm:$0xf]
        %v225 = vld [vmem:[%s1 + $0x30] sm:$0xf]
        %v226 = vld [vmem:[%s1 + $0x34] sm:$0xf]
        %v227 = vld [vmem:[%s1 + $0x38] sm:$0xf]
        %v228 = vld [vmem:[%s1 + $0x3c] sm:$0xf]
        %v229 = vld [vmem:[%s1 + $0x40] sm:$0xf]
        %v230 = vld [vmem:[%s1 + $0x44] sm:$0xf]
        %v231 = vld [vmem:[%s1 + $0x48] sm:$0xf]
        %v232 = vld [vmem:[%s1 + $0x4c] sm:$0xf]
        %v233 = vpack.c.bf16 %v204, %v203
        %v254 = vunpack.c.l.b16 %v213
        %v255 = vunpack.c.l.b16 %v214
        %v256 = vunpack.c.l.b16 %v215
        %v257 = vunpack.c.l.b16 %v216
        %v258 = vunpack.c.l.b16 %v217
        %v259 = vunpack.c.l.b16 %v218
        %v260 = vunpack.c.l.b16 %v219
        %v261 = vunpack.c.l.b16 %v220
        %v262 = vunpack.c.l.b16 %v221
        %v263 = vunpack.c.l.b16 %v222
        %v264 = vunpack.c.l.b16 %v223
        %v265 = vunpack.c.l.b16 %v224
        %v266 = vunpack.c.l.b16 %v225
        %v267 = vunpack.c.l.b16 %v226
        %v268 = vunpack.c.l.b16 %v227
        %v269 = vunpack.c.l.b16 %v228
        %v270 = vunpack.c.l.b16 %v229
        %v271 = vunpack.c.l.b16 %v230
        %v272 = vunpack.c.l.b16 %v231
        %v273 = vunpack.c.l.b16 %v232
        %v274 = vpack.c.b16 %v255, %v254
        %v275 = vpack.c.b16 %v257, %v256
        %v276 = vpack.c.b16 %v259, %v258
        %v277 = vpack.c.b16 %v261, %v260
        %v278 = vpack.c.b16 %v263, %v262
        %v279 = vpack.c.b16 %v265, %v264
        %v280 = vpack.c.b16 %v267, %v266
        %v281 = vpack.c.b16 %v269, %v268
        %v282 = vpack.c.b16 %v271, %v270
        %v283 = vpack.c.b16 %v273, %v272
        %vm284 = vcmask 130048
        %v286 = vsel %vm284, %v274, 0
        %v289 = vsel %vm284, %v275, 0
        %v292 = vsel %vm284, %v276, 0
        %v295 = vsel %vm284, %v277, 0
        %v298 = vsel %vm284, %v278, 0
        %v301 = vsel %vm284, %v279, 0
        %v304 = vsel %vm284, %v280, 0
        %v307 = vsel %vm284, %v281, 0
        %v310 = vsel %vm284, %v282, 0
        %v313 = vsel %vm284, %v283, 0
        %315 = vmatprep.subr.bf16.mxu0 0
        %316 = vmatpush1.bf16.msra.mxu0 %v233
        %317 = vmatprep.subr.bf16.mxu0 0
        %318 = vmatpush1.bf16.msra.mxu0 0
        %319 = vmatprep.subr.bf16.mxu0 0
        %320 = vmatpush1.bf16.msra.mxu0 0
        %321 = vmatprep.subr.bf16.mxu0 0
        %322 = vmatpush1.bf16.msra.mxu0 0
        %323 = vmatprep.subr.bf16.mxu0 0
        %324 = vmatpush1.bf16.msra.mxu0 0
        %325 = vmatprep.subr.bf16.mxu0 0
        %326 = vmatpush1.bf16.msra.mxu0 0
        %327 = vmatprep.subr.bf16.mxu0 0
        %328 = vmatpush1.bf16.msra.mxu0 0
        %329 = vmatprep.subr.bf16.mxu0 0
        %330 = vmatpush1.bf16.msra.mxu0 0
        %331 = vmatprep.subr.bf16.mxu0 0
        %332 = vmatpush1.bf16.msra.mxu0 0
        %333 = vmatprep.subr.bf16.mxu0 0
        %334 = vmatpush1.bf16.msra.mxu0 0
        %335 = vmatprep.subr.bf16.mxu0 0
        %336 = vmatpush1.bf16.msra.mxu0 0
        %337 = vmatprep.subr.bf16.mxu0 0
        %338 = vmatpush1.bf16.msra.mxu0 0
        %339 = vmatprep.subr.bf16.mxu0 0
        %340 = vmatpush1.bf16.msra.mxu0 0
        %341 = vmatprep.subr.bf16.mxu0 0
        %342 = vmatpush1.bf16.msra.mxu0 0
        %343 = vmatprep.subr.bf16.mxu0 0
        %344 = vmatpush1.bf16.msra.mxu0 0
        %345 = vmatprep.subr.bf16.mxu0 0
        %346 = vmatpush1.bf16.msra.mxu0 0
        %347 = vmatprep.mubr.bf16.mxu0 0
        %348 = vmatmul.mubr.bf16.gmra.mrb[0].mxu0 %v286
        %v349 = vpop.f32.mrb[0].mxu0
        %v350 = vadd.f32 0.0, %v349
        %v351 = vpop.f32.mrb[0].mxu0
        %v352 = vpop.f32.mrb[0].mxu0
        %v353 = vadd.f32 0.0, %v352
        %v354 = vpop.f32.mrb[0].mxu0
        %355 = vmatprep.mubr.bf16.mxu0 0
        %356 = vmatmul.mubr.bf16.gmra.mrb[0].mxu0 %v289
        %v357 = vpop.f32.mrb[0].mxu0
        %v358 = vadd.f32 0.0, %v357
        %v359 = vpop.f32.mrb[0].mxu0
        %v360 = vpop.f32.mrb[0].mxu0
        %v361 = vadd.f32 0.0, %v360
        %v362 = vpop.f32.mrb[0].mxu0
        %363 = vmatprep.mubr.bf16.mxu0 0
        %364 = vmatmul.mubr.bf16.gmra.mrb[0].mxu0 %v292
        %v365 = vpop.f32.mrb[0].mxu0
        %v366 = vadd.f32 0.0, %v365
        %v367 = vpop.f32.mrb[0].mxu0
        %v368 = vpop.f32.mrb[0].mxu0
        %v369 = vadd.f32 0.0, %v368
        %v370 = vpop.f32.mrb[0].mxu0
        %371 = vmatprep.mubr.bf16.mxu0 0
        %372 = vmatmul.mubr.bf16.gmra.mrb[0].mxu0 %v295
        %v373 = vpop.f32.mrb[0].mxu0
        %v374 = vadd.f32 0.0, %v373
        %v375 = vpop.f32.mrb[0].mxu0
        %v376 = vpop.f32.mrb[0].mxu0
        %v377 = vadd.f32 0.0, %v376
        %v378 = vpop.f32.mrb[0].mxu0
        %379 = vmatprep.mubr.bf16.mxu0 0
        %380 = vmatmul.mubr.bf16.gmra.mrb[0].mxu0 %v298
        %v381 = vpop.f32.mrb[0].mxu0
        %v382 = vadd.f32 0.0, %v381
        %v383 = vpop.f32.mrb[0].mxu0
        %v384 = vpop.f32.mrb[0].mxu0
        %v385 = vadd.f32 0.0, %v384
        %v386 = vpop.f32.mrb[0].mxu0
        %387 = vmatprep.mubr.bf16.mxu0 0
        %388 = vmatmul.mubr.bf16.gmra.mrb[0].mxu0 %v301
        %v389 = vpop.f32.mrb[0].mxu0
        %v390 = vadd.f32 0.0, %v389
        %v391 = vpop.f32.mrb[0].mxu0
        %v392 = vpop.f32.mrb[0].mxu0
        %v393 = vadd.f32 0.0, %v392
        %v394 = vpop.f32.mrb[0].mxu0
        %395 = vmatprep.mubr.bf16.mxu0 0
        %396 = vmatmul.mubr.bf16.gmra.mrb[0].mxu0 %v304
        %v397 = vpop.f32.mrb[0].mxu0
        %v398 = vadd.f32 0.0, %v397
        %v399 = vpop.f32.mrb[0].mxu0
        %v400 = vpop.f32.mrb[0].mxu0
        %v401 = vadd.f32 0.0, %v400
        %v402 = vpop.f32.mrb[0].mxu0
        %403 = vmatprep.mubr.bf16.mxu0 0
        %404 = vmatmul.mubr.bf16.gmra.mrb[0].mxu0 %v307
        %v405 = vpop.f32.mrb[0].mxu0
        %v406 = vadd.f32 0.0, %v405
        %v407 = vpop.f32.mrb[0].mxu0
        %v408 = vpop.f32.mrb[0].mxu0
        %v409 = vadd.f32 0.0, %v408
        %v410 = vpop.f32.mrb[0].mxu0
        %411 = vmatprep.mubr.bf16.mxu0 0
        %412 = vmatmul.mubr.bf16.gmra.mrb[0].mxu0 %v310
        %v413 = vpop.f32.mrb[0].mxu0
        %v414 = vadd.f32 0.0, %v413
        %v415 = vpop.f32.mrb[0].mxu0
        %v416 = vpop.f32.mrb[0].mxu0
        %v417 = vadd.f32 0.0, %v416
        %v418 = vpop.f32.mrb[0].mxu0
        %419 = vmatprep.mubr.bf16.mxu0 0
        %420 = vmatmul.mubr.bf16.gmra.mrb[0].mxu0 %v313
        %v421 = vpop.f32.mrb[0].mxu0
        %v422 = vadd.f32 0.0, %v421
        %v423 = vpop.f32.mrb[0].mxu0
        %v424 = vpop.f32.mrb[0].mxu0
        %v425 = vadd.f32 0.0, %v424
        %v426 = vpop.f32.mrb[0].mxu0
        %427 = vdwg.mxu0
        %v428 = vmul.f32 %v350, %v211
        %v429 = vmul.f32 %v353, %v212
        %v430 = vmul.f32 %v358, %v211
        %v431 = vmul.f32 %v361, %v212
        %v432 = vmul.f32 %v366, %v211
        %v433 = vmul.f32 %v369, %v212
        %v434 = vmul.f32 %v374, %v211
        %v435 = vmul.f32 %v377, %v212
        %v436 = vmul.f32 %v382, %v211
        %v437 = vmul.f32 %v385, %v212
        %v438 = vmul.f32 %v390, %v211
        %v439 = vmul.f32 %v393, %v212
        %v440 = vmul.f32 %v398, %v211
        %v441 = vmul.f32 %v401, %v212
        %v442 = vmul.f32 %v406, %v211
        %v443 = vmul.f32 %v409, %v212
        %v444 = vmul.f32 %v414, %v211
        %v445 = vmul.f32 %v417, %v212
        %v446 = vmul.f32 %v422, %v211
        %v447 = vmul.f32 %v425, %v212
        %v448 = vadd.f32 %v428, %v429
        %v449 = vrot.slane %v448, 4
        %v450 = vadd.f32 %v448, %v449
        %v451 = vrot.slane %v450, 2
        %v452 = vadd.f32 %v450, %v451
        %v453 = vrot.slane %v452, 1
        %v454 = vadd.f32 %v452, %v453
        %v455 = vadd.f32 %v430, %v431
        %v456 = vrot.slane %v455, 4
        %v457 = vadd.f32 %v455, %v456
        %v458 = vrot.slane %v457, 2
        %v459 = vadd.f32 %v457, %v458
        %v460 = vrot.slane %v459, 1
        %v461 = vadd.f32 %v459, %v460
        %v462 = vadd.f32 %v432, %v433
        %v463 = vrot.slane %v462, 4
        %v464 = vadd.f32 %v462, %v463
        %v465 = vrot.slane %v464, 2
        %v466 = vadd.f32 %v464, %v465
        %v467 = vrot.slane %v466, 1
        %v468 = vadd.f32 %v466, %v467
        %v469 = vadd.f32 %v434, %v435
        %v470 = vrot.slane %v469, 4
        %v471 = vadd.f32 %v469, %v470
        %v472 = vrot.slane %v471, 2
        %v473 = vadd.f32 %v471, %v472
        %v474 = vrot.slane %v473, 1
        %v475 = vadd.f32 %v473, %v474
        %v476 = vadd.f32 %v436, %v437
        %v477 = vrot.slane %v476, 4
        %v478 = vadd.f32 %v476, %v477
        %v479 = vrot.slane %v478, 2
        %v480 = vadd.f32 %v478, %v479
        %v481 = vrot.slane %v480, 1
        %v482 = vadd.f32 %v480, %v481
        %v483 = vadd.f32 %v438, %v439
        %v484 = vrot.slane %v483, 4
        %v485 = vadd.f32 %v483, %v484
        %v486 = vrot.slane %v485, 2
        %v487 = vadd.f32 %v485, %v486
        %v488 = vrot.slane %v487, 1
        %v489 = vadd.f32 %v487, %v488
        %v490 = vadd.f32 %v440, %v441
        %v491 = vrot.slane %v490, 4
        %v492 = vadd.f32 %v490, %v491
        %v493 = vrot.slane %v492, 2
        %v494 = vadd.f32 %v492, %v493
        %v495 = vrot.slane %v494, 1
        %v496 = vadd.f32 %v494, %v495
        %v497 = vadd.f32 %v442, %v443
        %v498 = vrot.slane %v497, 4
        %v499 = vadd.f32 %v497, %v498
        %v500 = vrot.slane %v499, 2
        %v501 = vadd.f32 %v499, %v500
        %v502 = vrot.slane %v501, 1
        %v503 = vadd.f32 %v501, %v502
        %v504 = vadd.f32 %v444, %v445
        %v505 = vrot.slane %v504, 4
        %v506 = vadd.f32 %v504, %v505
        %v507 = vrot.slane %v506, 2
        %v508 = vadd.f32 %v506, %v507
        %v509 = vrot.slane %v508, 1
        %v510 = vadd.f32 %v508, %v509
        %v511 = vadd.f32 %v446, %v447
        %v512 = vrot.slane %v511, 4
        %v513 = vadd.f32 %v511, %v512
        %v514 = vrot.slane %v513, 2
        %v515 = vadd.f32 %v513, %v514
        %v516 = vrot.slane %v515, 1
        %v517 = vadd.f32 %v515, %v516
        %vm528 = vcmask 1041409
        %v529 = vsel %vm528, %v461, %v454
        %vm530 = vcmask 1042434
        %v531 = vsel %vm530, %v468, %v529
        %vm532 = vcmask 1043459
        %v533 = vsel %vm532, %v475, %v531
        %vm534 = vcmask 1044484
        %v535 = vsel %vm534, %v482, %v533
        %vm536 = vcmask 1045509
        %v537 = vsel %vm536, %v489, %v535
        %vm538 = vcmask 1046534
        %v539 = vsel %vm538, %v496, %v537
        %vm540 = vcmask 1047559
        %v541 = vsel %vm540, %v503, %v539
        %v542 = vsel %vm528, %v517, %v510
        %545 = vst [vmem:[%s131] sm:$0xff] %v541
        %546 = vst [vmem:[%s131 + $0x8] sm:$0x3] %v542
        %s547 = sand.u32 %s64, 1
        %s548 = sand.u32 %s64, 1
        %s549 = smul.addr %s548, 16
        %s550 = scalar_lea.vmem [#allocation4], %s549
        // Predicated region
        $region33: #{_forward.1} parent=27 // pred_check
          %p551 = pneg %p74
        $region34: #{_forward.1} parent=27 // pred_check_branch
          %553 = sbr.rel (%p551) target = $region36
        $region35: #{_forward.1} parent=27 // pred_region
          %s554 = smul.addr %s14, 8
          %s555 = scalar_lea.vmem %s2, %s554
          // Predicated region
          $region37: #{_forward.1} parent=35 // pred_check
            _
          $region38: #{_forward.1} parent=35 // pred_check_branch
            %557 = sbr.rel (0) target = $region40
          $region39: #{_forward.1} parent=35 // pred_region
            // Predicated region
            $region41: #{_forward.1} parent=39 // pred_check
              _
            $region42: #{_forward.1} parent=39 // pred_check_branch
              %559 = sbr.rel (0) target = $region44
            $region43: #{_forward.1} parent=39 // pred_region
              // Predicated region
              $region56: #{_forward.1} parent=43 // pred_check
                _
              $region57: #{_forward.1} parent=43 // pred_check_branch
                %576 = sbr.rel (0) target = $region59
              $region58: #{_forward.1} parent=43 // pred_region
                loop: start=0, step=1, limit=1
                $region60: #{_forward.1} parent=58 // loop_pre_header
                  _
                $region61: #{_forward.1} parent=58 // loop_header
                  %s578 = sphi 0, %s582
                  %p579 = scmp.ge.s32.totalorder %s578, 1
                  %s583 = sphi %s550, %s550
                  %s584 = sphi %s555, %s555
                $region62: #{_forward.1} parent=58 // loop_header_branch
                  %581 = sbr.rel (%p579) target = $region66
                $region63: #{_forward.1} parent=58 // loop_body
                  %v585 = vld [vmem:[%s583] sm:$0xff]
                  %586 = vst [vmem:[%s584] sm:$0xff] %v585
                  %v587 = vld [vmem:[%s583 + $0x8] sm:$0xff]
                  %588 = vst [vmem:[%s584 + $0x10] sm:$0xff] %v587
                $region64: #{_forward.1} parent=58 // loop_footer
                  %s582 = sadd.s32 1, %s578
                $region65: #{_forward.1} parent=58 // loop_footer_branch
                  %577 = sbr.rel target = $region61
                $region66: #{_forward.1} parent=58 // loop_exit
                  _
              $region59: #{_forward.1} parent=43 // pred_fallthru
                _
              // Predicated region
              $region67: #{_forward.1} parent=43 // pred_check
                _
              $region68: #{_forward.1} parent=43 // pred_check_branch
                %590 = sbr.rel target = $region70
              $region69: #{_forward.1} parent=43 // pred_region
                _
              $region70: #{_forward.1} parent=43 // pred_fallthru
                _
            $region44: #{_forward.1} parent=39 // pred_fallthru
              _
            // Predicated region
            $region45: #{_forward.1} parent=39 // pred_check
              _
            $region46: #{_forward.1} parent=39 // pred_check_branch
              %561 = sbr.rel target = $region48
            $region47: #{_forward.1} parent=39 // pred_region
              loop: start=0, step=1, limit=1
              $region49: #{_forward.1} parent=47 // loop_pre_header
                _
              $region50: #{_forward.1} parent=47 // loop_header
                %s564 = sphi 0, %s568
                %p565 = scmp.ge.s32.totalorder %s564, 1
                %s569 = sphi %s550, %s550
                %s570 = sphi %s555, %s555
              $region51: #{_forward.1} parent=47 // loop_header_branch
                %567 = sbr.rel (%p565) target = $region55
              $region52: #{_forward.1} parent=47 // loop_body
                %v571 = vld [vmem:[%s569] sm:$0xff]
                %572 = vst [vmem:[%s570] sm:$0xff] %v571
                %v573 = vld [vmem:[%s569 + $0x8] sm:$0xff]
                %574 = vst [vmem:[%s570 + $0x10] sm:$0xff] %v573
              $region53: #{_forward.1} parent=47 // loop_footer
                %s568 = sadd.s32 1, %s564
              $region54: #{_forward.1} parent=47 // loop_footer_branch
                %563 = sbr.rel target = $region50
              $region55: #{_forward.1} parent=47 // loop_exit
                _
            $region48: #{_forward.1} parent=39 // pred_fallthru
              _
          $region40: #{_forward.1} parent=35 // pred_fallthru
            _
          %591 = vnop
        $region36: #{_forward.1} parent=27 // pred_fallthru
          _
      $region28: #{_forward.1} parent=5 // pred_fallthru
        _
      %p592 = scmp.le.s32.totalorder 2, %s9
      // Predicated region
      $region71: #{_forward.1} parent=5 // pred_check
        %p593 = pneg %p592
      $region72: #{_forward.1} parent=5 // pred_check_branch
        %595 = sbr.rel (%p593) target = $region74
      $region73: #{_forward.1} parent=5 // pred_region
        %s596 = ssub.s32 %s9, 2
        // Predicated region
        $region75: #{_forward.1} parent=73 // pred_check
          %p597 = pneg %p80
        $region76: #{_forward.1} parent=73 // pred_check_branch
          %599 = sbr.rel (%p597) target = $region78
        $region77: #{_forward.1} parent=73 // pred_region
          %s600 = sand.u32 %s65, 1
          %s601 = sand.u32 %s65, 1
          %s602 = smul.addr %s601, 16
          %s603 = scalar_lea.vmem [#allocation4], %s602
        $region78: #{_forward.1} parent=73 // pred_fallthru
          _
      $region74: #{_forward.1} parent=5 // pred_fallthru
        _
    $region6: #{_forward.1} parent=1 // loop_footer
      %s13 = sadd.s32 1, %s9
    $region7: #{_forward.1} parent=1 // loop_footer_branch
      %8 = sbr.rel target = $region3
    $region8: #{_forward.1} parent=1 // loop_exit
      _
    %604 = vsyncpa [#allocation3], 1
    %s605 = scalar_lea.sflag [#allocation3], 1
    %606 = vsyncpa %s605, 1

</llo_original>
